<compile_context>
chip_gen: v7x
topology: tpu7x:2x2x1
jax: 0.10.0
libtpu: 0.0.40
codegen_flags: <defaults>
</compile_context>

<pallas_src>
import numpy as np
import jax
import jax.numpy as jnp
from jax.experimental import pallas as pl
from jax.experimental.pallas import tpu as pltpu

# ---------------- module hyper-parameters (AudioNet.__init__ args) ----------------
CHANNEL_NUM = 2        # channel_num
P_NUM       = 8        # p_num           (out channels of each front_tconv)
FCONV_NF    = 4        # fconv_nfilter
TCONV_K     = 3        # tconv_ksize
FCONV_K     = 3        # fconv_ksize     (odd -> padding = K//2 keeps length)
FRAME       = 16       # frame_size
POOL        = 2        # pool_size
FC1_DIM     = 32       # fc1_dim
LSTM_DIM    = 16       # lstm_dim
LSTM_LAYERS = 1        # lstm_layer

FCONV_PAD = FCONV_K // 2
T1 = FRAME - TCONV_K + 1                       # front temporal-conv output length
T2 = P_NUM + 2 * FCONV_PAD - FCONV_K + 1       # fconv output length (== P_NUM)
T3 = T2 // POOL                                # after max-pool
FC1_INDIM = FCONV_NF * T3                      # fc1_indim


def _vmem_spec():
    return pl.BlockSpec(memory_space=pltpu.MemorySpace.VMEM)


# ---------------------------------------------------------------------------------
# Single fused kernel: front convs -> fconv/pool/fc1 -> LSTM -> fc3.
# B, S and layer count are baked in as Python constants (static shapes).
# ---------------------------------------------------------------------------------
def _make_kernel(B, S, n_layers):
    def kernel(frames_ref, wt_ref, bsum_ref, wfc_ref, bfc_ref, w1_ref, b1_ref, *rest):
        # rest = (wih_0, whh_0, b_0, ..., wih_{L-1}, whh_{L-1}, b_{L-1}, w3t, b3, out)
        lstm_refs = rest[:3 * n_layers]
        w3_ref, b3_ref, out_ref = rest[3 * n_layers:]

        C = frames_ref.shape[0]
        H = LSTM_DIM

        # ---- stage 1: per-channel Conv1d(1->P), sum over channels, max over time, ReLU
        wt = wt_ref[...]                                        # (C, Kt, P)
        acc = None
        for c in range(C):
            xc = frames_ref[c]                                  # (N, FRAME)
            for k in range(TCONV_K):
                term = xc[:, k:k + T1, None] * wt[c, k][None, None, :]   # (N, T1, P)
                acc = term if acc is None else acc + term
        feat = jnp.maximum(jnp.max(acc, axis=1) + bsum_ref[...], 0.0)    # (N, P)

        # ---- stage 2: fconv ('same' pad folded into wfc_eff) + ReLU,
        #               then maxpool + fc1 folded into one contraction + ReLU
        z = jnp.dot(feat, wfc_ref[...], preferred_element_type=jnp.float32) + bfc_ref[...]
        z = jnp.maximum(z, 0.0)                                 # (N, F*T2), lane = f*T2 + j
        # pairwise max of adjacent lanes; only even-offset lanes are picked up by the
        # zero-row structure of w1_eff -> exact maxpool(2) + PyTorch (f, t) flatten + fc1.
        m = jnp.maximum(z[:, :-1], z[:, 1:])                    # (N, F*T2 - 1)
        y = jnp.dot(m, w1_ref[...], preferred_element_type=jnp.float32) + b1_ref[...]
        y = jnp.maximum(y, 0.0)                                 # (N, FC1_DIM)

        # ---- stage 3: LSTM, packed gates (i, f, o, g), hoisted input projection
        x_seq = y                                               # (N, D), rows time-major
        h = None
        for l in range(n_layers):
            wih = lstm_refs[3 * l][...]                         # (D, 4H)
            whh = lstm_refs[3 * l + 1][...]                     # (H, 4H)
            b_p = lstm_refs[3 * l + 2][...]                     # (1, 4H)
            # input projection + bias for ALL timesteps at once (not on recurrent path)
            gx = jnp.dot(x_seq, wih, preferred_element_type=jnp.float32) + b_p   # (N, 4H)
            h = jnp.zeros((B, H), jnp.float32)
            c_state = jnp.zeros((B, H), jnp.float32)
            hs = []
            for t in range(S):                                  # S is small & static
                g_all = gx[t * B:(t + 1) * B, :] + jnp.dot(
                    h, whh, preferred_element_type=jnp.float32)               # (B, 4H)
                sig = jax.nn.sigmoid(g_all[:, :3 * H])          # i, f, o in one 48-lane logistic
                i_g = sig[:, 0:H]
                f_g = sig[:, H:2 * H]
                o_g = sig[:, 2 * H:3 * H]
                g_g = jnp.tanh(g_all[:, 3 * H:])
                c_state = f_g * c_state + i_g * g_g
                h = o_g * jnp.tanh(c_state)
                if l + 1 < n_layers:
                    hs.append(h)
            if l + 1 < n_layers:
                x_seq = jnp.concatenate(hs, axis=0)             # (N, H), keeps time-major rows

        # ---- stage 4: fc3 on the last hidden state only (no sequence writeback)
        out_ref[...] = jnp.dot(h, w3_ref[...], preferred_element_type=jnp.float32) + b3_ref[...]

    return kernel


# ---------------------------------------------------------------------------------
# Effective-weight builders (host-side, numpy): fold conv padding / pool selection
# into zero-structured weight matrices consumed by the kernel's matmuls.
# ---------------------------------------------------------------------------------
def _build_fconv_eff(wf_torch, bf_torch):
    # wf_torch: (F, 1, Kf), bf_torch: (F,)
    # z[n, f*T2 + j] = bf[f] + sum_k wf[f,0,k] * feat[n, j + k - pad]  (zero-padded)
    W = np.zeros((P_NUM, FCONV_NF * T2), np.float32)
    bfull = np.zeros((1, FCONV_NF * T2), np.float32)
    for f in range(FCONV_NF):
        for j in range(T2):
            bfull[0, f * T2 + j] = bf_torch[f]
            for k in range(FCONV_K):
                i = j + k - FCONV_PAD
                if 0 <= i < P_NUM:
                    W[i, f * T2 + j] = wf_torch[f, 0, k]
    return jnp.asarray(W), jnp.asarray(bfull)


def _build_fc1_eff(w1_torch):
    # w1_torch: (FC1_DIM, FC1_INDIM); PyTorch flatten of (F, T3) -> input index f*T3 + j2.
    # Kernel input is m[:, l] with l = f*T2 + 2*j2 holding the pooled value; all other
    # rows are zero (they absorb the unused odd-offset maxima).
    w1t = w1_torch.T                                            # (FC1_INDIM, FC1_DIM)
    W = np.zeros((FCONV_NF * T2 - 1, FC1_DIM), np.float32)
    for f in range(FCONV_NF):
        for j2 in range(T3):
            W[f * T2 + 2 * j2, :] = w1t[f * T3 + j2, :]
    return jnp.asarray(W)


# ---------------------------------------------------------------------------------
# Parameter init (deterministic, synthetic). Created in PyTorch shapes then
# re-laid-out for the fused kernel.
# ---------------------------------------------------------------------------------
def init_params(key):
    ks = jax.random.split(key, 8 + LSTM_LAYERS)

    def rnd(k, shape, scale=0.1):
        return scale * jax.random.normal(k, shape, dtype=jnp.float32)

    # front_tconv[c] = Conv1d(1, P, Kt): weight (P,1,Kt), bias (P,)
    wt_torch = rnd(ks[0], (CHANNEL_NUM, P_NUM, 1, TCONV_K))
    bt_torch = rnd(ks[1], (CHANNEL_NUM, P_NUM))
    wt = wt_torch[:, :, 0, :].transpose(0, 2, 1)                # (C, Kt, P)
    bsum = jnp.sum(bt_torch, axis=0, keepdims=True)             # (1, P): biases sum over channels

    # fconv = Conv1d(1, F, Kf, padding=Kf//2)
    wf_torch = rnd(ks[2], (FCONV_NF, 1, FCONV_K))
    bf_torch = rnd(ks[3], (FCONV_NF,))
    wfc_eff, bfc = _build_fconv_eff(np.asarray(wf_torch), np.asarray(bf_torch))

    # fc1 = Linear(FC1_INDIM, FC1_DIM)
    w1_torch = rnd(ks[4], (FC1_DIM, FC1_INDIM))
    b1_torch = rnd(ks[5], (FC1_DIM,))
    w1_eff = _build_fc1_eff(np.asarray(w1_torch))
    b1 = b1_torch[None, :]

    # LSTM: PyTorch gate order (i, f, g, o) -> packed kernel order (i, f, o, g)
    lstm = []
    H = LSTM_DIM
    for l in range(LSTM_LAYERS):
        d_in = FC1_DIM if l == 0 else LSTM_DIM
        k0, k1, k2, k3 = jax.random.split(ks[6 + l], 4)
        wih_t = rnd(k0, (4 * H, d_in))
        whh_t = rnd(k1, (4 * H, H))
        bih = rnd(k2, (4 * H,))
        bhh = rnd(k3, (4 * H,))

        def repack(w):  # (4H, X) gate order i,f,g,o -> (X, 4H) gate order i,f,o,g
            return jnp.concatenate([w[0:H], w[H:2 * H], w[3 * H:4 * H], w[2 * H:3 * H]],
                                   axis=0).T

        b_sum = bih + bhh
        b_p = jnp.concatenate([b_sum[0:H], b_sum[H:2 * H],
                               b_sum[3 * H:4 * H], b_sum[2 * H:3 * H]])[None, :]
        lstm.append(dict(wih=repack(wih_t), whh=repack(whh_t), b=b_p))

    # fc3 = Linear(LSTM_DIM, 2)
    w3_torch = rnd(ks[6 + LSTM_LAYERS], (2, LSTM_DIM))
    b3_torch = rnd(ks[7 + LSTM_LAYERS], (2,))

    return dict(wt=wt, bsum=bsum, wfc_eff=wfc_eff, bfc=bfc, w1_eff=w1_eff, b1=b1,
                lstm=lstm, w3t=w3_torch.T, b3=b3_torch[None, :])


# ---------------------------------------------------------------------------------
# Forward pass: one reshape/transpose of the raw input + ONE fused pallas_call.
# ---------------------------------------------------------------------------------
@jax.jit
def audionet_forward(x, params):
    B, C, L = x.shape
    assert C == CHANNEL_NUM
    S = L // FRAME                      # subseq_num
    Lt = S * FRAME
    N = B * S

    xt = x[:, :, :Lt].astype(jnp.float32)
    # (B, C, S, FRAME) -> (C, S, B, FRAME) -> (C, N, FRAME); row n = s*B + b (time-major)
    frames = xt.reshape(B, C, S, FRAME).transpose(1, 2, 0, 3).reshape(C, N, FRAME)

    lstm_args = []
    for layer in params["lstm"]:
        lstm_args += [layer["wih"], layer["whh"], layer["b"]]

    args = [frames, params["wt"], params["bsum"], params["wfc_eff"], params["bfc"],
            params["w1_eff"], params["b1"], *lstm_args, params["w3t"], params["b3"]]

    kernel = _make_kernel(B, S, len(params["lstm"]))
    # TODO(synk): at production batch sizes, add a leading grid axis over rows with
    # dimension_semantics=("parallel",) so v7x's two TensorCores split the batch.
    return pl.pallas_call(
        kernel,
        out_shape=jax.ShapeDtypeStruct((B, 2), jnp.float32),
        in_specs=[_vmem_spec()] * len(args),
        out_specs=_vmem_spec(),
    )(*args)


if __name__ == "__main__":
    key = jax.random.PRNGKey(0)
    k_x, k_p = jax.random.split(key)

    B, L = 2, 64                                  # audio_len=64 -> subseq_num=4
    x = jax.random.normal(k_x, (B, CHANNEL_NUM, L), dtype=jnp.float32)
    params = init_params(k_p)

    out = audionet_forward(x, params)
    out = jax.block_until_ready(out)

    assert out.shape == (B, 2), out.shape
    assert bool(jnp.all(jnp.isfinite(out)))
    print("KERNEL_OK")
</pallas_src>

<mosaic_0001>
module attributes {stable_mosaic.version = 11 : i64} {
  func.func @kernel(%arg0: memref<2x8x16xf32, #tpu.memory_space<vmem>>, %arg1: memref<2x3x8xf32, #tpu.memory_space<vmem>>, %arg2: memref<1x8xf32, #tpu.memory_space<vmem>>, %arg3: memref<8x32xf32, #tpu.memory_space<vmem>>, %arg4: memref<1x32xf32, #tpu.memory_space<vmem>>, %arg5: memref<31x32xf32, #tpu.memory_space<vmem>>, %arg6: memref<1x32xf32, #tpu.memory_space<vmem>>, %arg7: memref<32x64xf32, #tpu.memory_space<vmem>>, %arg8: memref<16x64xf32, #tpu.memory_space<vmem>>, %arg9: memref<1x64xf32, #tpu.memory_space<vmem>>, %arg10: memref<16x2xf32, #tpu.memory_space<vmem>>, %arg11: memref<1x2xf32, #tpu.memory_space<vmem>>, %arg12: memref<2x2xf32, #tpu.memory_space<vmem>>) attributes {dimension_semantics = [], scalar_prefetch = 0 : i64, scratch_operands = 0 : i64, tpu.core_type = #tpu.core_type<tc>} {
    %c0 = arith.constant 0 : index
    %c0_0 = arith.constant 0 : index
    %c0_1 = arith.constant 0 : index
    %0 = vector.load %arg1[%c0, %c0_0, %c0_1] : memref<2x3x8xf32, #tpu.memory_space<vmem>>, vector<2x3x8xf32>
    %c0_2 = arith.constant 0 : index
    %c0_3 = arith.constant 0 : index
    %c0_4 = arith.constant 0 : index
    %1 = vector.load %arg0[%c0_2, %c0_3, %c0_4] : memref<2x8x16xf32, #tpu.memory_space<vmem>>, vector<1x8x16xf32>
    %2 = vector.shape_cast %1 : vector<1x8x16xf32> to vector<8x16xf32>
    %3 = vector.extract_strided_slice %2 {offsets = [0, 0], sizes = [8, 14], strides = [1, 1]} : vector<8x16xf32> to vector<8x14xf32>
    %4 = vector.shape_cast %3 : vector<8x14xf32> to vector<8x14x1xf32>
    %5 = vector.extract_strided_slice %0 {offsets = [0, 0, 0], sizes = [1, 1, 8], strides = [1, 1, 1]} : vector<2x3x8xf32> to vector<1x1x8xf32>
    %6 = vector.shape_cast %5 : vector<1x1x8xf32> to vector<8xf32>
    %7 = vector.shape_cast %6 : vector<8xf32> to vector<1x1x8xf32>
    %8 = vector.broadcast %4 : vector<8x14x1xf32> to vector<8x14x8xf32>
    %9 = vector.broadcast %7 : vector<1x1x8xf32> to vector<8x14x8xf32>
    %10 = arith.mulf %8, %9 : vector<8x14x8xf32>
    %11 = vector.extract_strided_slice %2 {offsets = [0, 1], sizes = [8, 14], strides = [1, 1]} : vector<8x16xf32> to vector<8x14xf32>
    %12 = vector.shape_cast %11 : vector<8x14xf32> to vector<8x14x1xf32>
    %13 = vector.extract_strided_slice %0 {offsets = [0, 1, 0], sizes = [1, 1, 8], strides = [1, 1, 1]} : vector<2x3x8xf32> to vector<1x1x8xf32>
    %14 = vector.shape_cast %13 : vector<1x1x8xf32> to vector<8xf32>
    %15 = vector.shape_cast %14 : vector<8xf32> to vector<1x1x8xf32>
    %16 = vector.broadcast %12 : vector<8x14x1xf32> to vector<8x14x8xf32>
    %17 = vector.broadcast %15 : vector<1x1x8xf32> to vector<8x14x8xf32>
    %18 = arith.mulf %16, %17 : vector<8x14x8xf32>
    %19 = arith.addf %10, %18 : vector<8x14x8xf32>
    %20 = vector.extract_strided_slice %2 {offsets = [0, 2], sizes = [8, 14], strides = [1, 1]} : vector<8x16xf32> to vector<8x14xf32>
    %21 = vector.shape_cast %20 : vector<8x14xf32> to vector<8x14x1xf32>
    %22 = vector.extract_strided_slice %0 {offsets = [0, 2, 0], sizes = [1, 1, 8], strides = [1, 1, 1]} : vector<2x3x8xf32> to vector<1x1x8xf32>
    %23 = vector.shape_cast %22 : vector<1x1x8xf32> to vector<8xf32>
    %24 = vector.shape_cast %23 : vector<8xf32> to vector<1x1x8xf32>
    %25 = vector.broadcast %21 : vector<8x14x1xf32> to vector<8x14x8xf32>
    %26 = vector.broadcast %24 : vector<1x1x8xf32> to vector<8x14x8xf32>
    %27 = arith.mulf %25, %26 : vector<8x14x8xf32>
    %28 = arith.addf %19, %27 : vector<8x14x8xf32>
    %c1 = arith.constant 1 : index
    %c0_5 = arith.constant 0 : index
    %c0_6 = arith.constant 0 : index
    %29 = vector.load %arg0[%c1, %c0_5, %c0_6] : memref<2x8x16xf32, #tpu.memory_space<vmem>>, vector<1x8x16xf32>
    %30 = vector.shape_cast %29 : vector<1x8x16xf32> to vector<8x16xf32>
    %31 = vector.extract_strided_slice %30 {offsets = [0, 0], sizes = [8, 14], strides = [1, 1]} : vector<8x16xf32> to vector<8x14xf32>
    %32 = vector.shape_cast %31 : vector<8x14xf32> to vector<8x14x1xf32>
    %33 = vector.extract_strided_slice %0 {offsets = [1, 0, 0], sizes = [1, 1, 8], strides = [1, 1, 1]} : vector<2x3x8xf32> to vector<1x1x8xf32>
    %34 = vector.shape_cast %33 : vector<1x1x8xf32> to vector<8xf32>
    %35 = vector.shape_cast %34 : vector<8xf32> to vector<1x1x8xf32>
    %36 = vector.broadcast %32 : vector<8x14x1xf32> to vector<8x14x8xf32>
    %37 = vector.broadcast %35 : vector<1x1x8xf32> to vector<8x14x8xf32>
    %38 = arith.mulf %36, %37 : vector<8x14x8xf32>
    %39 = arith.addf %28, %38 : vector<8x14x8xf32>
    %40 = vector.extract_strided_slice %30 {offsets = [0, 1], sizes = [8, 14], strides = [1, 1]} : vector<8x16xf32> to vector<8x14xf32>
    %41 = vector.shape_cast %40 : vector<8x14xf32> to vector<8x14x1xf32>
    %42 = vector.extract_strided_slice %0 {offsets = [1, 1, 0], sizes = [1, 1, 8], strides = [1, 1, 1]} : vector<2x3x8xf32> to vector<1x1x8xf32>
    %43 = vector.shape_cast %42 : vector<1x1x8xf32> to vector<8xf32>
    %44 = vector.shape_cast %43 : vector<8xf32> to vector<1x1x8xf32>
    %45 = vector.broadcast %41 : vector<8x14x1xf32> to vector<8x14x8xf32>
    %46 = vector.broadcast %44 : vector<1x1x8xf32> to vector<8x14x8xf32>
    %47 = arith.mulf %45, %46 : vector<8x14x8xf32>
    %48 = arith.addf %39, %47 : vector<8x14x8xf32>
    %49 = vector.extract_strided_slice %30 {offsets = [0, 2], sizes = [8, 14], strides = [1, 1]} : vector<8x16xf32> to vector<8x14xf32>
    %50 = vector.shape_cast %49 : vector<8x14xf32> to vector<8x14x1xf32>
    %51 = vector.extract_strided_slice %0 {offsets = [1, 2, 0], sizes = [1, 1, 8], strides = [1, 1, 1]} : vector<2x3x8xf32> to vector<1x1x8xf32>
    %52 = vector.shape_cast %51 : vector<1x1x8xf32> to vector<8xf32>
    %53 = vector.shape_cast %52 : vector<8xf32> to vector<1x1x8xf32>
    %54 = vector.broadcast %50 : vector<8x14x1xf32> to vector<8x14x8xf32>
    %55 = vector.broadcast %53 : vector<1x1x8xf32> to vector<8x14x8xf32>
    %56 = arith.mulf %54, %55 : vector<8x14x8xf32>
    %57 = arith.addf %48, %56 : vector<8x14x8xf32>
    %cst = arith.constant dense<0xFF800000> : vector<8x8xf32>
    %58 = vector.multi_reduction <maximumf>, %57, %cst [1] : vector<8x14x8xf32> to vector<8x8xf32>
    %c0_7 = arith.constant 0 : index
    %c0_8 = arith.constant 0 : index
    %59 = vector.load %arg2[%c0_7, %c0_8] : memref<1x8xf32, #tpu.memory_space<vmem>>, vector<1x8xf32>
    %60 = vector.broadcast %59 : vector<1x8xf32> to vector<8x8xf32>
    %61 = arith.addf %58, %60 : vector<8x8xf32>
    %cst_9 = arith.constant 0.000000e+00 : f32
    %62 = vector.broadcast %cst_9 : f32 to vector<8x8xf32>
    %63 = arith.maximumf %61, %62 : vector<8x8xf32>
    %c0_10 = arith.constant 0 : index
    %c0_11 = arith.constant 0 : index
    %64 = vector.load %arg3[%c0_10, %c0_11] : memref<8x32xf32, #tpu.memory_space<vmem>>, vector<8x32xf32>
    %cst_12 = arith.constant dense<0.000000e+00> : vector<8x32xf32>
    %65 = tpu.matmul %63, %64, %cst_12 {dimension_numbers = #tpu.dot_dimension_numbers<[1], [0], [0], [1], [0, 0, 1, 1], [], []>} : vector<8x8xf32>, vector<8x32xf32>, vector<8x32xf32> -> vector<8x32xf32>
    %c0_13 = arith.constant 0 : index
    %c0_14 = arith.constant 0 : index
    %66 = vector.load %arg4[%c0_13, %c0_14] : memref<1x32xf32, #tpu.memory_space<vmem>>, vector<1x32xf32>
    %67 = vector.broadcast %66 : vector<1x32xf32> to vector<8x32xf32>
    %68 = arith.addf %65, %67 : vector<8x32xf32>
    %cst_15 = arith.constant 0.000000e+00 : f32
    %69 = vector.broadcast %cst_15 : f32 to vector<8x32xf32>
    %70 = arith.maximumf %68, %69 : vector<8x32xf32>
    %71 = vector.extract_strided_slice %70 {offsets = [0, 0], sizes = [8, 31], strides = [1, 1]} : vector<8x32xf32> to vector<8x31xf32>
    %72 = vector.extract_strided_slice %70 {offsets = [0, 1], sizes = [8, 31], strides = [1, 1]} : vector<8x32xf32> to vector<8x31xf32>
    %73 = arith.maximumf %71, %72 : vector<8x31xf32>
    %c0_16 = arith.constant 0 : index
    %c0_17 = arith.constant 0 : index
    %74 = vector.load %arg5[%c0_16, %c0_17] : memref<31x32xf32, #tpu.memory_space<vmem>>, vector<31x32xf32>
    %cst_18 = arith.constant dense<0.000000e+00> : vector<8x32xf32>
    %75 = tpu.matmul %73, %74, %cst_18 {dimension_numbers = #tpu.dot_dimension_numbers<[1], [0], [0], [1], [0, 0, 1, 1], [], []>} : vector<8x31xf32>, vector<31x32xf32>, vector<8x32xf32> -> vector<8x32xf32>
    %c0_19 = arith.constant 0 : index
    %c0_20 = arith.constant 0 : index
    %76 = vector.load %arg6[%c0_19, %c0_20] : memref<1x32xf32, #tpu.memory_space<vmem>>, vector<1x32xf32>
    %77 = vector.broadcast %76 : vector<1x32xf32> to vector<8x32xf32>
    %78 = arith.addf %75, %77 : vector<8x32xf32>
    %cst_21 = arith.constant 0.000000e+00 : f32
    %79 = vector.broadcast %cst_21 : f32 to vector<8x32xf32>
    %80 = arith.maximumf %78, %79 : vector<8x32xf32>
    %c0_22 = arith.constant 0 : index
    %c0_23 = arith.constant 0 : index
    %81 = vector.load %arg7[%c0_22, %c0_23] : memref<32x64xf32, #tpu.memory_space<vmem>>, vector<32x64xf32>
    %c0_24 = arith.constant 0 : index
    %c0_25 = arith.constant 0 : index
    %82 = vector.load %arg8[%c0_24, %c0_25] : memref<16x64xf32, #tpu.memory_space<vmem>>, vector<16x64xf32>
    %c0_26 = arith.constant 0 : index
    %c0_27 = arith.constant 0 : index
    %83 = vector.load %arg9[%c0_26, %c0_27] : memref<1x64xf32, #tpu.memory_space<vmem>>, vector<1x64xf32>
    %cst_28 = arith.constant dense<0.000000e+00> : vector<8x64xf32>
    %84 = tpu.matmul %80, %81, %cst_28 {dimension_numbers = #tpu.dot_dimension_numbers<[1], [0], [0], [1], [0, 0, 1, 1], [], []>} : vector<8x32xf32>, vector<32x64xf32>, vector<8x64xf32> -> vector<8x64xf32>
    %85 = vector.broadcast %83 : vector<1x64xf32> to vector<8x64xf32>
    %86 = arith.addf %84, %85 : vector<8x64xf32>
    %cst_29 = arith.constant 0.000000e+00 : f32
    %87 = vector.broadcast %cst_29 : f32 to vector<2x16xf32>
    %cst_30 = arith.constant 0.000000e+00 : f32
    %88 = vector.broadcast %cst_30 : f32 to vector<2x16xf32>
    %89 = vector.extract_strided_slice %86 {offsets = [0, 0], sizes = [2, 64], strides = [1, 1]} : vector<8x64xf32> to vector<2x64xf32>
    %cst_31 = arith.constant dense<0.000000e+00> : vector<2x64xf32>
    %90 = tpu.matmul %87, %82, %cst_31 {dimension_numbers = #tpu.dot_dimension_numbers<[1], [0], [0], [1], [0, 0, 1, 1], [], []>} : vector<2x16xf32>, vector<16x64xf32>, vector<2x64xf32> -> vector<2x64xf32>
    %91 = arith.addf %89, %90 : vector<2x64xf32>
    %92 = vector.extract_strided_slice %91 {offsets = [0, 0], sizes = [2, 48], strides = [1, 1]} : vector<2x64xf32> to vector<2x48xf32>
    %93 = arith.negf %92 : vector<2x48xf32>
    %94 = math.exp %93 : vector<2x48xf32>
    %cst_32 = arith.constant 1.000000e+00 : f32
    %95 = vector.broadcast %cst_32 : f32 to vector<2x48xf32>
    %96 = arith.addf %95, %94 : vector<2x48xf32>
    %97 = arith.divf %95, %96 : vector<2x48xf32>
    %98 = vector.extract_strided_slice %97 {offsets = [0, 0], sizes = [2, 16], strides = [1, 1]} : vector<2x48xf32> to vector<2x16xf32>
    %99 = vector.extract_strided_slice %97 {offsets = [0, 16], sizes = [2, 16], strides = [1, 1]} : vector<2x48xf32> to vector<2x16xf32>
    %100 = vector.extract_strided_slice %97 {offsets = [0, 32], sizes = [2, 16], strides = [1, 1]} : vector<2x48xf32> to vector<2x16xf32>
    %101 = vector.extract_strided_slice %91 {offsets = [0, 48], sizes = [2, 16], strides = [1, 1]} : vector<2x64xf32> to vector<2x16xf32>
    %102 = math.tanh %101 : vector<2x16xf32>
    %103 = arith.mulf %99, %88 : vector<2x16xf32>
    %104 = arith.mulf %98, %102 : vector<2x16xf32>
    %105 = arith.addf %103, %104 : vector<2x16xf32>
    %106 = math.tanh %105 : vector<2x16xf32>
    %107 = arith.mulf %100, %106 : vector<2x16xf32>
    %108 = vector.extract_strided_slice %86 {offsets = [2, 0], sizes = [2, 64], strides = [1, 1]} : vector<8x64xf32> to vector<2x64xf32>
    %cst_33 = arith.constant dense<0.000000e+00> : vector<2x64xf32>
    %109 = tpu.matmul %107, %82, %cst_33 {dimension_numbers = #tpu.dot_dimension_numbers<[1], [0], [0], [1], [0, 0, 1, 1], [], []>} : vector<2x16xf32>, vector<16x64xf32>, vector<2x64xf32> -> vector<2x64xf32>
    %110 = arith.addf %108, %109 : vector<2x64xf32>
    %111 = vector.extract_strided_slice %110 {offsets = [0, 0], sizes = [2, 48], strides = [1, 1]} : vector<2x64xf32> to vector<2x48xf32>
    %112 = arith.negf %111 : vector<2x48xf32>
    %113 = math.exp %112 : vector<2x48xf32>
    %cst_34 = arith.constant 1.000000e+00 : f32
    %114 = vector.broadcast %cst_34 : f32 to vector<2x48xf32>
    %115 = arith.addf %114, %113 : vector<2x48xf32>
    %116 = arith.divf %114, %115 : vector<2x48xf32>
    %117 = vector.extract_strided_slice %116 {offsets = [0, 0], sizes = [2, 16], strides = [1, 1]} : vector<2x48xf32> to vector<2x16xf32>
    %118 = vector.extract_strided_slice %116 {offsets = [0, 16], sizes = [2, 16], strides = [1, 1]} : vector<2x48xf32> to vector<2x16xf32>
    %119 = vector.extract_strided_slice %116 {offsets = [0, 32], sizes = [2, 16], strides = [1, 1]} : vector<2x48xf32> to vector<2x16xf32>
    %120 = vector.extract_strided_slice %110 {offsets = [0, 48], sizes = [2, 16], strides = [1, 1]} : vector<2x64xf32> to vector<2x16xf32>
    %121 = math.tanh %120 : vector<2x16xf32>
    %122 = arith.mulf %118, %105 : vector<2x16xf32>
    %123 = arith.mulf %117, %121 : vector<2x16xf32>
    %124 = arith.addf %122, %123 : vector<2x16xf32>
    %125 = math.tanh %124 : vector<2x16xf32>
    %126 = arith.mulf %119, %125 : vector<2x16xf32>
    %127 = vector.extract_strided_slice %86 {offsets = [4, 0], sizes = [2, 64], strides = [1, 1]} : vector<8x64xf32> to vector<2x64xf32>
    %cst_35 = arith.constant dense<0.000000e+00> : vector<2x64xf32>
    %128 = tpu.matmul %126, %82, %cst_35 {dimension_numbers = #tpu.dot_dimension_numbers<[1], [0], [0], [1], [0, 0, 1, 1], [], []>} : vector<2x16xf32>, vector<16x64xf32>, vector<2x64xf32> -> vector<2x64xf32>
    %129 = arith.addf %127, %128 : vector<2x64xf32>
    %130 = vector.extract_strided_slice %129 {offsets = [0, 0], sizes = [2, 48], strides = [1, 1]} : vector<2x64xf32> to vector<2x48xf32>
    %131 = arith.negf %130 : vector<2x48xf32>
    %132 = math.exp %131 : vector<2x48xf32>
    %cst_36 = arith.constant 1.000000e+00 : f32
    %133 = vector.broadcast %cst_36 : f32 to vector<2x48xf32>
    %134 = arith.addf %133, %132 : vector<2x48xf32>
    %135 = arith.divf %133, %134 : vector<2x48xf32>
    %136 = vector.extract_strided_slice %135 {offsets = [0, 0], sizes = [2, 16], strides = [1, 1]} : vector<2x48xf32> to vector<2x16xf32>
    %137 = vector.extract_strided_slice %135 {offsets = [0, 16], sizes = [2, 16], strides = [1, 1]} : vector<2x48xf32> to vector<2x16xf32>
    %138 = vector.extract_strided_slice %135 {offsets = [0, 32], sizes = [2, 16], strides = [1, 1]} : vector<2x48xf32> to vector<2x16xf32>
    %139 = vector.extract_strided_slice %129 {offsets = [0, 48], sizes = [2, 16], strides = [1, 1]} : vector<2x64xf32> to vector<2x16xf32>
    %140 = math.tanh %139 : vector<2x16xf32>
    %141 = arith.mulf %137, %124 : vector<2x16xf32>
    %142 = arith.mulf %136, %140 : vector<2x16xf32>
    %143 = arith.addf %141, %142 : vector<2x16xf32>
    %144 = math.tanh %143 : vector<2x16xf32>
    %145 = arith.mulf %138, %144 : vector<2x16xf32>
    %146 = vector.extract_strided_slice %86 {offsets = [6, 0], sizes = [2, 64], strides = [1, 1]} : vector<8x64xf32> to vector<2x64xf32>
    %cst_37 = arith.constant dense<0.000000e+00> : vector<2x64xf32>
    %147 = tpu.matmul %145, %82, %cst_37 {dimension_numbers = #tpu.dot_dimension_numbers<[1], [0], [0], [1], [0, 0, 1, 1], [], []>} : vector<2x16xf32>, vector<16x64xf32>, vector<2x64xf32> -> vector<2x64xf32>
    %148 = arith.addf %146, %147 : vector<2x64xf32>
    %149 = vector.extract_strided_slice %148 {offsets = [0, 0], sizes = [2, 48], strides = [1, 1]} : vector<2x64xf32> to vector<2x48xf32>
    %150 = arith.negf %149 : vector<2x48xf32>
    %151 = math.exp %150 : vector<2x48xf32>
    %cst_38 = arith.constant 1.000000e+00 : f32
    %152 = vector.broadcast %cst_38 : f32 to vector<2x48xf32>
    %153 = arith.addf %152, %151 : vector<2x48xf32>
    %154 = arith.divf %152, %153 : vector<2x48xf32>
    %155 = vector.extract_strided_slice %154 {offsets = [0, 0], sizes = [2, 16], strides = [1, 1]} : vector<2x48xf32> to vector<2x16xf32>
    %156 = vector.extract_strided_slice %154 {offsets = [0, 16], sizes = [2, 16], strides = [1, 1]} : vector<2x48xf32> to vector<2x16xf32>
    %157 = vector.extract_strided_slice %154 {offsets = [0, 32], sizes = [2, 16], strides = [1, 1]} : vector<2x48xf32> to vector<2x16xf32>
    %158 = vector.extract_strided_slice %148 {offsets = [0, 48], sizes = [2, 16], strides = [1, 1]} : vector<2x64xf32> to vector<2x16xf32>
    %159 = math.tanh %158 : vector<2x16xf32>
    %160 = arith.mulf %156, %143 : vector<2x16xf32>
    %161 = arith.mulf %155, %159 : vector<2x16xf32>
    %162 = arith.addf %160, %161 : vector<2x16xf32>
    %163 = math.tanh %162 : vector<2x16xf32>
    %164 = arith.mulf %157, %163 : vector<2x16xf32>
    %c0_39 = arith.constant 0 : index
    %c0_40 = arith.constant 0 : index
    %165 = vector.load %arg10[%c0_39, %c0_40] : memref<16x2xf32, #tpu.memory_space<vmem>>, vector<16x2xf32>
    %cst_41 = arith.constant dense<0.000000e+00> : vector<2x2xf32>
    %166 = tpu.matmul %164, %165, %cst_41 {dimension_numbers = #tpu.dot_dimension_numbers<[1], [0], [0], [1], [0, 0, 1, 1], [], []>} : vector<2x16xf32>, vector<16x2xf32>, vector<2x2xf32> -> vector<2x2xf32>
    %c0_42 = arith.constant 0 : index
    %c0_43 = arith.constant 0 : index
    %167 = vector.load %arg11[%c0_42, %c0_43] : memref<1x2xf32, #tpu.memory_space<vmem>>, vector<1x2xf32>
    %168 = vector.broadcast %167 : vector<1x2xf32> to vector<2x2xf32>
    %169 = arith.addf %166, %168 : vector<2x2xf32>
    %c0_44 = arith.constant 0 : index
    %c0_45 = arith.constant 0 : index
    %170 = vector.load %arg12[%c0_44, %c0_45] : memref<2x2xf32, #tpu.memory_space<vmem>>, vector<2x2xf32>
    tpu.vector_store %arg12[%c0_44, %c0_45], %169 {strides = array<i32>} : memref<2x2xf32, #tpu.memory_space<vmem>>, vector<2x2xf32>,
    return
  }
}

</mosaic_0001>

<llo_original>
// kernel: audionet_forward.1
$region0: #{audionet_forward.1}
  #allocation0 [shape = 'u32[]', space=smem, size = 0x4, offset = 0x4, fixed_abs, tag = 'smem constant byte address 0x4 - core index']
  #allocation1 [shape = 'u32[144,128]{1,0:T(1,128)}', space=vmem, size = 0x12000, scoped, tag = 'internal scratch']
  %s0 = inlined_call_operand.vmem [shape: f32[2,8,16], index: 0, kind: input, shape index: {}]
  %s1 = inlined_call_operand.vmem [shape: f32[2,3,8], index: 1, kind: input, shape index: {}]
  %s2 = inlined_call_operand.vmem [shape: f32[1,8], index: 2, kind: input, shape index: {}]
  %s3 = inlined_call_operand.vmem [shape: f32[8,32], index: 3, kind: input, shape index: {}]
  %s4 = inlined_call_operand.vmem [shape: f32[1,32], index: 4, kind: input, shape index: {}]
  %s5 = inlined_call_operand.vmem [shape: f32[31,32], index: 5, kind: input, shape index: {}]
  %s6 = inlined_call_operand.hbm [shape: f32[1,32], index: 6, kind: input, shape index: {}]
  %s7 = inlined_call_operand.vmem [shape: f32[32,64], index: 7, kind: input, shape index: {}]
  %s8 = inlined_call_operand.vmem [shape: f32[16,64], index: 8, kind: input, shape index: {}]
  %s9 = inlined_call_operand.vmem [shape: f32[1,64], index: 9, kind: input, shape index: {}]
  %s10 = inlined_call_operand.vmem [shape: f32[16,2], index: 10, kind: input, shape index: {}]
  %s11 = inlined_call_operand.hbm [shape: f32[1,2], index: 11, kind: input, shape index: {}]
  %s12 = inlined_call_operand.hbm [shape: f32[2,2], index: 12, kind: output, shape index: {}]
  %s13 = sld [smem:[#allocation0]]
  $region66: #{audionet_forward.1} parent=0
    _
  %s15 = ssub.s32 1, %s13
  %s16 = scalar_select 0, %s15, %s13
  $region1: #{audionet_forward.1} parent=0
    #allocation2 [shape = 'u8[512]{0}', space=vmem, size = 0x400, scoped, tag = 'input window, operand 6, single buffered']
    #allocation3 [shape = 's32[1]{0}', space=sflag, size = 0x4, scoped, tag = 'scoped memory for audionet_forward.1']
    #allocation4 [shape = 's32[1]{0}', space=sflag, size = 0x4, scoped, tag = 'scoped memory for audionet_forward.1']
    #allocation5 [shape = 'u8[512]{0}', space=vmem, size = 0x400, scoped, tag = 'input window, operand 11, single buffered']
    #allocation6 [shape = 's32[1]{0}', space=sflag, size = 0x4, scoped, tag = 'scoped memory for audionet_forward.1']
    #allocation7 [shape = 'u8[1024]{0}', space=vmem, size = 0x400, scoped, tag = 'output window, operand 0, single buffered']
    %17 = vsyncpa [#allocation3], 0
    %18 = vsyncpa [#allocation6], 0
    %19 = vsyncpa [#allocation4], 0
    // Predicated region
    $region2: #{audionet_forward.1} parent=1 // pred_check
      _
    $region3: #{audionet_forward.1} parent=1 // pred_check_branch
      %21 = sbr.rel (0) target = $region5
    $region4: #{audionet_forward.1} parent=1 // pred_region
      _
    $region5: #{audionet_forward.1} parent=1 // pred_fallthru
      _
    // Predicated region
    $region6: #{audionet_forward.1} parent=1 // pred_check
      _
    $region7: #{audionet_forward.1} parent=1 // pred_check_branch
      %23 = sbr.rel (0) target = $region9
    $region8: #{audionet_forward.1} parent=1 // pred_region
      _
    $region9: #{audionet_forward.1} parent=1 // pred_fallthru
      _
    // Predicated region
    $region10: #{audionet_forward.1} parent=1 // pred_check
      _
    $region11: #{audionet_forward.1} parent=1 // pred_check_branch
      %25 = sbr.rel (0) target = $region13
    $region12: #{audionet_forward.1} parent=1 // pred_region
      _
    $region13: #{audionet_forward.1} parent=1 // pred_fallthru
      _
    // Predicated region
    $region14: #{audionet_forward.1} parent=1 // pred_check
      _
    $region15: #{audionet_forward.1} parent=1 // pred_check_branch
      %27 = sbr.rel (0) target = $region17
    $region16: #{audionet_forward.1} parent=1 // pred_region
      _
    $region17: #{audionet_forward.1} parent=1 // pred_fallthru
      _
    // Predicated region
    $region18: #{audionet_forward.1} parent=1 // pred_check
      _
    $region19: #{audionet_forward.1} parent=1 // pred_check_branch
      %29 = sbr.rel (0) target = $region21
    $region20: #{audionet_forward.1} parent=1 // pred_region
      _
    $region21: #{audionet_forward.1} parent=1 // pred_fallthru
      _
    // Predicated region
    $region22: #{audionet_forward.1} parent=1 // pred_check
      _
    $region23: #{audionet_forward.1} parent=1 // pred_check_branch
      %31 = sbr.rel (0) target = $region25
    $region24: #{audionet_forward.1} parent=1 // pred_region
      _
    $region25: #{audionet_forward.1} parent=1 // pred_fallthru
      _
    // Predicated region
    $region26: #{audionet_forward.1} parent=1 // pred_check
      _
    $region27: #{audionet_forward.1} parent=1 // pred_check_branch
      %33 = sbr.rel (0) target = $region29
    $region28: #{audionet_forward.1} parent=1 // pred_region
      %s35 = ssub.s32 16, 16
      %36 = vsyncadd [#allocation3], %s35
      %s38 = sshll.u32 [#allocation2], 4
      %s39 = int_to_ptr.vmem [resolvable:$true] %s38
      %41 = dma.hbm_to_vmem [thread:$0]  %s6, 16, %s39, [#allocation3]
    $region29: #{audionet_forward.1} parent=1 // pred_fallthru
      _
    // Predicated region
    $region30: #{audionet_forward.1} parent=1 // pred_check
      _
    $region31: #{audionet_forward.1} parent=1 // pred_check_branch
      %43 = sbr.rel (0) target = $region33
    $region32: #{audionet_forward.1} parent=1 // pred_region
      _
    $region33: #{audionet_forward.1} parent=1 // pred_fallthru
      _
    // Predicated region
    $region34: #{audionet_forward.1} parent=1 // pred_check
      _
    $region35: #{audionet_forward.1} parent=1 // pred_check_branch
      %45 = sbr.rel (0) target = $region37
    $region36: #{audionet_forward.1} parent=1 // pred_region
      _
    $region37: #{audionet_forward.1} parent=1 // pred_fallthru
      _
    // Predicated region
    $region38: #{audionet_forward.1} parent=1 // pred_check
      _
    $region39: #{audionet_forward.1} parent=1 // pred_check_branch
      %47 = sbr.rel (0) target = $region41
    $region40: #{audionet_forward.1} parent=1 // pred_region
      _
    $region41: #{audionet_forward.1} parent=1 // pred_fallthru
      _
    // Predicated region
    $region42: #{audionet_forward.1} parent=1 // pred_check
      _
    $region43: #{audionet_forward.1} parent=1 // pred_check_branch
      %49 = sbr.rel (0) target = $region45
    $region44: #{audionet_forward.1} parent=1 // pred_region
      _
    $region45: #{audionet_forward.1} parent=1 // pred_fallthru
      _
    // Predicated region
    $region46: #{audionet_forward.1} parent=1 // pred_check
      _
    $region47: #{audionet_forward.1} parent=1 // pred_check_branch
      %51 = sbr.rel (0) target = $region49
    $region48: #{audionet_forward.1} parent=1 // pred_region
      %s53 = ssub.s32 16, 16
      %54 = vsyncadd [#allocation6], %s53
      %s56 = sshll.u32 [#allocation5], 4
      %s57 = int_to_ptr.vmem [resolvable:$true] %s56
      %59 = dma.hbm_to_vmem [thread:$0]  %s11, 16, %s57, [#allocation6]
    $region49: #{audionet_forward.1} parent=1 // pred_fallthru
      _
    // Predicated region
    $region50: #{audionet_forward.1} parent=1 // pred_check
      _
    $region51: #{audionet_forward.1} parent=1 // pred_check_branch
      %61 = sbr.rel (0) target = $region53
    $region52: #{audionet_forward.1} parent=1 // pred_region
      %62 = dma.done [#allocation3], 16
    $region53: #{audionet_forward.1} parent=1 // pred_fallthru
      _
    // Predicated region
    $region54: #{audionet_forward.1} parent=1 // pred_check
      _
    $region55: #{audionet_forward.1} parent=1 // pred_check_branch
      %64 = sbr.rel (0) target = $region57
    $region56: #{audionet_forward.1} parent=1 // pred_region
      %65 = dma.done [#allocation6], 16
    $region57: #{audionet_forward.1} parent=1 // pred_fallthru
      _
    %v66 = vld [vmem:[%s1] sm:$0x7]
    %v67 = vld [vmem:[%s1 + $0x4] sm:$0x7]
    %v68 = vld [vmem:[%s0] sm:$0xff]
    %v69 = vlaneseq
    %v70 = vshrl.u32 %v69, 7
    %v71 = vsub.s32 0, %v70
    %v72 = vrot.slane %v68, %v71
    %74 = vbcast.lane.b32.xlu0 %v72, 256
    %v75 = vpop.permute.xlu0 %74
    %s77 = sor.u32 256, 8
    %78 = vbcast.lane.b32.xlu0 %v72, %s77
    %v79 = vpop.permute.xlu0 %78
    %v80 = vlaneseq
    %v81 = vshrl.u32 %v80, 7
    %v82 = vsub.s32 1, %v81
    %v83 = vrot.slane %v68, %v82
    %85 = vbcast.lane.b32.xlu0 %v83, 256
    %v86 = vpop.permute.xlu0 %85
    %s88 = sor.u32 256, 8
    %89 = vbcast.lane.b32.xlu0 %v83, %s88
    %v90 = vpop.permute.xlu0 %89
    %v91 = vlaneseq
    %v92 = vshrl.u32 %v91, 7
    %v93 = vsub.s32 2, %v92
    %v94 = vrot.slane %v68, %v93
    %96 = vbcast.lane.b32.xlu0 %v94, 256
    %v97 = vpop.permute.xlu0 %96
    %s99 = sor.u32 256, 8
    %100 = vbcast.lane.b32.xlu0 %v94, %s99
    %v101 = vpop.permute.xlu0 %100
    %v102 = vlaneseq
    %v103 = vshrl.u32 %v102, 7
    %v104 = vsub.s32 3, %v103
    %v105 = vrot.slane %v68, %v104
    %107 = vbcast.lane.b32.xlu0 %v105, 256
    %v108 = vpop.permute.xlu0 %107
    %s110 = sor.u32 256, 8
    %111 = vbcast.lane.b32.xlu0 %v105, %s110
    %v112 = vpop.permute.xlu0 %111
    %v113 = vlaneseq
    %v114 = vshrl.u32 %v113, 7
    %v115 = vsub.s32 4, %v114
    %v116 = vrot.slane %v68, %v115
    %118 = vbcast.lane.b32.xlu0 %v116, 256
    %v119 = vpop.permute.xlu0 %118
    %s121 = sor.u32 256, 8
    %122 = vbcast.lane.b32.xlu0 %v116, %s121
    %v123 = vpop.permute.xlu0 %122
    %v124 = vlaneseq
    %v125 = vshrl.u32 %v124, 7
    %v126 = vsub.s32 5, %v125
    %v127 = vrot.slane %v68, %v126
    %129 = vbcast.lane.b32.xlu0 %v127, 256
    %v130 = vpop.permute.xlu0 %129
    %s132 = sor.u32 256, 8
    %133 = vbcast.lane.b32.xlu0 %v127, %s132
    %v134 = vpop.permute.xlu0 %133
    %v135 = vlaneseq
    %v136 = vshrl.u32 %v135, 7
    %v137 = vsub.s32 6, %v136
    %v138 = vrot.slane %v68, %v137
    %140 = vbcast.lane.b32.xlu0 %v138, 256
    %v141 = vpop.permute.xlu0 %140
    %s143 = sor.u32 256, 8
    %144 = vbcast.lane.b32.xlu0 %v138, %s143
    %v145 = vpop.permute.xlu0 %144
    %v146 = vlaneseq
    %v147 = vshrl.u32 %v146, 7
    %v148 = vsub.s32 7, %v147
    %v149 = vrot.slane %v68, %v148
    %151 = vbcast.lane.b32.xlu0 %v149, 256
    %v152 = vpop.permute.xlu0 %151
    %s154 = sor.u32 256, 8
    %155 = vbcast.lane.b32.xlu0 %v149, %s154
    %v156 = vpop.permute.xlu0 %155
    %v157 = vlaneseq
    %v158 = vshrl.u32 %v157, 7
    %v159 = vsub.s32 0, %v158
    %v160 = vrot.slane %v66, %v159
    %v161 = vmul.f32 %v75, %v160
    %v162 = vmul.f32 %v79, %v160
    %v163 = vmul.f32 %v86, %v160
    %v164 = vmul.f32 %v90, %v160
    %v165 = vmul.f32 %v97, %v160
    %v166 = vmul.f32 %v101, %v160
    %v167 = vmul.f32 %v108, %v160
    %v168 = vmul.f32 %v112, %v160
    %v169 = vmul.f32 %v119, %v160
    %v170 = vmul.f32 %v123, %v160
    %v171 = vmul.f32 %v130, %v160
    %v172 = vmul.f32 %v134, %v160
    %v173 = vmul.f32 %v141, %v160
    %v174 = vmul.f32 %v145, %v160
    %v175 = vmul.f32 %v152, %v160
    %v176 = vmul.f32 %v156, %v160
    %s178 = sor.u32 256, 1
    %179 = vbcast.lane.b32.xlu0 %v72, %s178
    %v180 = vpop.permute.xlu0 %179
    %s182 = sor.u32 256, 9
    %183 = vbcast.lane.b32.xlu0 %v72, %s182
    %v184 = vpop.permute.xlu0 %183
    %s186 = sor.u32 256, 1
    %187 = vbcast.lane.b32.xlu0 %v83, %s186
    %v188 = vpop.permute.xlu0 %187
    %s190 = sor.u32 256, 9
    %191 = vbcast.lane.b32.xlu0 %v83, %s190
    %v192 = vpop.permute.xlu0 %191
    %s194 = sor.u32 256, 1
    %195 = vbcast.lane.b32.xlu0 %v94, %s194
    %v196 = vpop.permute.xlu0 %195
    %s198 = sor.u32 256, 9
    %199 = vbcast.lane.b32.xlu0 %v94, %s198
    %v200 = vpop.permute.xlu0 %199
    %s202 = sor.u32 256, 1
    %203 = vbcast.lane.b32.xlu0 %v105, %s202
    %v204 = vpop.permute.xlu0 %203
    %s206 = sor.u32 256, 9
    %207 = vbcast.lane.b32.xlu0 %v105, %s206
    %v208 = vpop.permute.xlu0 %207
    %s210 = sor.u32 256, 1
    %211 = vbcast.lane.b32.xlu0 %v116, %s210
    %v212 = vpop.permute.xlu0 %211
    %s214 = sor.u32 256, 9
    %215 = vbcast.lane.b32.xlu0 %v116, %s214
    %v216 = vpop.permute.xlu0 %215
    %s218 = sor.u32 256, 1
    %219 = vbcast.lane.b32.xlu0 %v127, %s218
    %v220 = vpop.permute.xlu0 %219
    %s222 = sor.u32 256, 9
    %223 = vbcast.lane.b32.xlu0 %v127, %s222
    %v224 = vpop.permute.xlu0 %223
    %s226 = sor.u32 256, 1
    %227 = vbcast.lane.b32.xlu0 %v138, %s226
    %v228 = vpop.permute.xlu0 %227
    %s230 = sor.u32 256, 9
    %231 = vbcast.lane.b32.xlu0 %v138, %s230
    %v232 = vpop.permute.xlu0 %231
    %s234 = sor.u32 256, 1
    %235 = vbcast.lane.b32.xlu0 %v149, %s234
    %v236 = vpop.permute.xlu0 %235
    %s238 = sor.u32 256, 9
    %239 = vbcast.lane.b32.xlu0 %v149, %s238
    %v240 = vpop.permute.xlu0 %239
    %v241 = vlaneseq
    %v242 = vshrl.u32 %v241, 7
    %v243 = vsub.s32 1, %v242
    %v244 = vrot.slane %v66, %v243
    %v245 = vmul.f32 %v180, %v244
    %v246 = vmul.f32 %v184, %v244
    %v247 = vmul.f32 %v188, %v244
    %v248 = vmul.f32 %v192, %v244
    %v249 = vmul.f32 %v196, %v244
    %v250 = vmul.f32 %v200, %v244
    %v251 = vmul.f32 %v204, %v244
    %v252 = vmul.f32 %v208, %v244
    %v253 = vmul.f32 %v212, %v244
    %v254 = vmul.f32 %v216, %v244
    %v255 = vmul.f32 %v220, %v244
    %v256 = vmul.f32 %v224, %v244
    %v257 = vmul.f32 %v228, %v244
    %v258 = vmul.f32 %v232, %v244
    %v259 = vmul.f32 %v236, %v244
    %v260 = vmul.f32 %v240, %v244
    %v261 = vadd.f32 %v161, %v245
    %v262 = vadd.f32 %v162, %v246
    %v263 = vadd.f32 %v163, %v247
    %v264 = vadd.f32 %v164, %v248
    %v265 = vadd.f32 %v165, %v249
    %v266 = vadd.f32 %v166, %v250
    %v267 = vadd.f32 %v167, %v251
    %v268 = vadd.f32 %v168, %v252
    %v269 = vadd.f32 %v169, %v253
    %v270 = vadd.f32 %v170, %v254
    %v271 = vadd.f32 %v171, %v255
    %v272 = vadd.f32 %v172, %v256
    %v273 = vadd.f32 %v173, %v257
    %v274 = vadd.f32 %v174, %v258
    %v275 = vadd.f32 %v175, %v259
    %v276 = vadd.f32 %v176, %v260
    %s278 = sor.u32 256, 2
    %279 = vbcast.lane.b32.xlu0 %v72, %s278
    %v280 = vpop.permute.xlu0 %279
    %s282 = sor.u32 256, 10
    %283 = vbcast.lane.b32.xlu0 %v72, %s282
    %v284 = vpop.permute.xlu0 %283
    %s286 = sor.u32 256, 2
    %287 = vbcast.lane.b32.xlu0 %v83, %s286
    %v288 = vpop.permute.xlu0 %287
    %s290 = sor.u32 256, 10
    %291 = vbcast.lane.b32.xlu0 %v83, %s290
    %v292 = vpop.permute.xlu0 %291
    %s294 = sor.u32 256, 2
    %295 = vbcast.lane.b32.xlu0 %v94, %s294
    %v296 = vpop.permute.xlu0 %295
    %s298 = sor.u32 256, 10
    %299 = vbcast.lane.b32.xlu0 %v94, %s298
    %v300 = vpop.permute.xlu0 %299
    %s302 = sor.u32 256, 2
    %303 = vbcast.lane.b32.xlu0 %v105, %s302
    %v304 = vpop.permute.xlu0 %303
    %s306 = sor.u32 256, 10
    %307 = vbcast.lane.b32.xlu0 %v105, %s306
    %v308 = vpop.permute.xlu0 %307
    %s310 = sor.u32 256, 2
    %311 = vbcast.lane.b32.xlu0 %v116, %s310
    %v312 = vpop.permute.xlu0 %311
    %s314 = sor.u32 256, 10
    %315 = vbcast.lane.b32.xlu0 %v116, %s314
    %v316 = vpop.permute.xlu0 %315
    %s318 = sor.u32 256, 2
    %319 = vbcast.lane.b32.xlu0 %v127, %s318
    %v320 = vpop.permute.xlu0 %319
    %s322 = sor.u32 256, 10
    %323 = vbcast.lane.b32.xlu0 %v127, %s322
    %v324 = vpop.permute.xlu0 %323
    %s326 = sor.u32 256, 2
    %327 = vbcast.lane.b32.xlu0 %v138, %s326
    %v328 = vpop.permute.xlu0 %327
    %s330 = sor.u32 256, 10
    %331 = vbcast.lane.b32.xlu0 %v138, %s330
    %v332 = vpop.permute.xlu0 %331
    %s334 = sor.u32 256, 2
    %335 = vbcast.lane.b32.xlu0 %v149, %s334
    %v336 = vpop.permute.xlu0 %335
    %s338 = sor.u32 256, 10
    %339 = vbcast.lane.b32.xlu0 %v149, %s338
    %v340 = vpop.permute.xlu0 %339
    %v341 = vlaneseq
    %v342 = vshrl.u32 %v341, 7
    %v343 = vsub.s32 2, %v342
    %v344 = vrot.slane %v66, %v343
    %v345 = vmul.f32 %v280, %v344
    %v346 = vmul.f32 %v284, %v344
    %v347 = vmul.f32 %v288, %v344
    %v348 = vmul.f32 %v292, %v344
    %v349 = vmul.f32 %v296, %v344
    %v350 = vmul.f32 %v300, %v344
    %v351 = vmul.f32 %v304, %v344
    %v352 = vmul.f32 %v308, %v344
    %v353 = vmul.f32 %v312, %v344
    %v354 = vmul.f32 %v316, %v344
    %v355 = vmul.f32 %v320, %v344
    %v356 = vmul.f32 %v324, %v344
    %v357 = vmul.f32 %v328, %v344
    %v358 = vmul.f32 %v332, %v344
    %v359 = vmul.f32 %v336, %v344
    %v360 = vmul.f32 %v340, %v344
    %v361 = vadd.f32 %v261, %v345
    %v362 = vadd.f32 %v262, %v346
    %v363 = vadd.f32 %v263, %v347
    %v364 = vadd.f32 %v264, %v348
    %v365 = vadd.f32 %v265, %v349
    %v366 = vadd.f32 %v266, %v350
    %v367 = vadd.f32 %v267, %v351
    %v368 = vadd.f32 %v268, %v352
    %v369 = vadd.f32 %v269, %v353
    %v370 = vadd.f32 %v270, %v354
    %v371 = vadd.f32 %v271, %v355
    %v372 = vadd.f32 %v272, %v356
    %v373 = vadd.f32 %v273, %v357
    %v374 = vadd.f32 %v274, %v358
    %v375 = vadd.f32 %v275, %v359
    %v376 = vadd.f32 %v276, %v360
    %s377 = scalar_lea.vmem %s0, 8
    %v378 = vld [vmem:[%s377] sm:$0xff]
    %v379 = vlaneseq
    %v380 = vshrl.u32 %v379, 7
    %v381 = vsub.s32 0, %v380
    %v382 = vrot.slane %v378, %v381
    %384 = vbcast.lane.b32.xlu0 %v382, 256
    %v385 = vpop.permute.xlu0 %384
    %s387 = sor.u32 256, 8
    %388 = vbcast.lane.b32.xlu0 %v382, %s387
    %v389 = vpop.permute.xlu0 %388
    %v390 = vlaneseq
    %v391 = vshrl.u32 %v390, 7
    %v392 = vsub.s32 1, %v391
    %v393 = vrot.slane %v378, %v392
    %395 = vbcast.lane.b32.xlu0 %v393, 256
    %v396 = vpop.permute.xlu0 %395
    %s398 = sor.u32 256, 8
    %399 = vbcast.lane.b32.xlu0 %v393, %s398
    %v400 = vpop.permute.xlu0 %399
    %v401 = vlaneseq
    %v402 = vshrl.u32 %v401, 7
    %v403 = vsub.s32 2, %v402
    %v404 = vrot.slane %v378, %v403
    %406 = vbcast.lane.b32.xlu0 %v404, 256
    %v407 = vpop.permute.xlu0 %406
    %s409 = sor.u32 256, 8
    %410 = vbcast.lane.b32.xlu0 %v404, %s409
    %v411 = vpop.permute.xlu0 %410
    %v412 = vlaneseq
    %v413 = vshrl.u32 %v412, 7
    %v414 = vsub.s32 3, %v413
    %v415 = vrot.slane %v378, %v414
    %417 = vbcast.lane.b32.xlu0 %v415, 256
    %v418 = vpop.permute.xlu0 %417
    %s420 = sor.u32 256, 8
    %421 = vbcast.lane.b32.xlu0 %v415, %s420
    %v422 = vpop.permute.xlu0 %421
    %v423 = vlaneseq
    %v424 = vshrl.u32 %v423, 7
    %v425 = vsub.s32 4, %v424
    %v426 = vrot.slane %v378, %v425
    %428 = vbcast.lane.b32.xlu0 %v426, 256
    %v429 = vpop.permute.xlu0 %428
    %s431 = sor.u32 256, 8
    %432 = vbcast.lane.b32.xlu0 %v426, %s431
    %v433 = vpop.permute.xlu0 %432
    %v434 = vlaneseq
    %v435 = vshrl.u32 %v434, 7
    %v436 = vsub.s32 5, %v435
    %v437 = vrot.slane %v378, %v436
    %439 = vbcast.lane.b32.xlu0 %v437, 256
    %v440 = vpop.permute.xlu0 %439
    %s442 = sor.u32 256, 8
    %443 = vbcast.lane.b32.xlu0 %v437, %s442
    %v444 = vpop.permute.xlu0 %443
    %v445 = vlaneseq
    %v446 = vshrl.u32 %v445, 7
    %v447 = vsub.s32 6, %v446
    %v448 = vrot.slane %v378, %v447
    %450 = vbcast.lane.b32.xlu0 %v448, 256
    %v451 = vpop.permute.xlu0 %450
    %s453 = sor.u32 256, 8
    %454 = vbcast.lane.b32.xlu0 %v448, %s453
    %v455 = vpop.permute.xlu0 %454
    %v456 = vlaneseq
    %v457 = vshrl.u32 %v456, 7
    %v458 = vsub.s32 7, %v457
    %v459 = vrot.slane %v378, %v458
    %461 = vbcast.lane.b32.xlu0 %v459, 256
    %v462 = vpop.permute.xlu0 %461
    %s464 = sor.u32 256, 8
    %465 = vbcast.lane.b32.xlu0 %v459, %s464
    %v466 = vpop.permute.xlu0 %465
    %v467 = vlaneseq
    %v468 = vshrl.u32 %v467, 7
    %v469 = vsub.s32 0, %v468
    %v470 = vrot.slane %v67, %v469
    %v471 = vmul.f32 %v385, %v470
    %v472 = vmul.f32 %v389, %v470
    %v473 = vmul.f32 %v396, %v470
    %v474 = vmul.f32 %v400, %v470
    %v475 = vmul.f32 %v407, %v470
    %v476 = vmul.f32 %v411, %v470
    %v477 = vmul.f32 %v418, %v470
    %v478 = vmul.f32 %v422, %v470
    %v479 = vmul.f32 %v429, %v470
    %v480 = vmul.f32 %v433, %v470
    %v481 = vmul.f32 %v440, %v470
    %v482 = vmul.f32 %v444, %v470
    %v483 = vmul.f32 %v451, %v470
    %v484 = vmul.f32 %v455, %v470
    %v485 = vmul.f32 %v462, %v470
    %v486 = vmul.f32 %v466, %v470
    %v487 = vadd.f32 %v361, %v471
    %v488 = vadd.f32 %v362, %v472
    %v489 = vadd.f32 %v363, %v473
    %v490 = vadd.f32 %v364, %v474
    %v491 = vadd.f32 %v365, %v475
    %v492 = vadd.f32 %v366, %v476
    %v493 = vadd.f32 %v367, %v477
    %v494 = vadd.f32 %v368, %v478
    %v495 = vadd.f32 %v369, %v479
    %v496 = vadd.f32 %v370, %v480
    %v497 = vadd.f32 %v371, %v481
    %v498 = vadd.f32 %v372, %v482
    %v499 = vadd.f32 %v373, %v483
    %v500 = vadd.f32 %v374, %v484
    %v501 = vadd.f32 %v375, %v485
    %v502 = vadd.f32 %v376, %v486
    %s504 = sor.u32 256, 1
    %505 = vbcast.lane.b32.xlu0 %v382, %s504
    %v506 = vpop.permute.xlu0 %505
    %s508 = sor.u32 256, 9
    %509 = vbcast.lane.b32.xlu0 %v382, %s508
    %v510 = vpop.permute.xlu0 %509
    %s512 = sor.u32 256, 1
    %513 = vbcast.lane.b32.xlu0 %v393, %s512
    %v514 = vpop.permute.xlu0 %513
    %s516 = sor.u32 256, 9
    %517 = vbcast.lane.b32.xlu0 %v393, %s516
    %v518 = vpop.permute.xlu0 %517
    %s520 = sor.u32 256, 1
    %521 = vbcast.lane.b32.xlu0 %v404, %s520
    %v522 = vpop.permute.xlu0 %521
    %s524 = sor.u32 256, 9
    %525 = vbcast.lane.b32.xlu0 %v404, %s524
    %v526 = vpop.permute.xlu0 %525
    %s528 = sor.u32 256, 1
    %529 = vbcast.lane.b32.xlu0 %v415, %s528
    %v530 = vpop.permute.xlu0 %529
    %s532 = sor.u32 256, 9
    %533 = vbcast.lane.b32.xlu0 %v415, %s532
    %v534 = vpop.permute.xlu0 %533
    %s536 = sor.u32 256, 1
    %537 = vbcast.lane.b32.xlu0 %v426, %s536
    %v538 = vpop.permute.xlu0 %537
    %s540 = sor.u32 256, 9
    %541 = vbcast.lane.b32.xlu0 %v426, %s540
    %v542 = vpop.permute.xlu0 %541
    %s544 = sor.u32 256, 1
    %545 = vbcast.lane.b32.xlu0 %v437, %s544
    %v546 = vpop.permute.xlu0 %545
    %s548 = sor.u32 256, 9
    %549 = vbcast.lane.b32.xlu0 %v437, %s548
    %v550 = vpop.permute.xlu0 %549
    %s552 = sor.u32 256, 1
    %553 = vbcast.lane.b32.xlu0 %v448, %s552
    %v554 = vpop.permute.xlu0 %553
    %s556 = sor.u32 256, 9
    %557 = vbcast.lane.b32.xlu0 %v448, %s556
    %v558 = vpop.permute.xlu0 %557
    %s560 = sor.u32 256, 1
    %561 = vbcast.lane.b32.xlu0 %v459, %s560
    %v562 = vpop.permute.xlu0 %561
    %s564 = sor.u32 256, 9
    %565 = vbcast.lane.b32.xlu0 %v459, %s564
    %v566 = vpop.permute.xlu0 %565
    %v567 = vlaneseq
    %v568 = vshrl.u32 %v567, 7
    %v569 = vsub.s32 1, %v568
    %v570 = vrot.slane %v67, %v569
    %v571 = vmul.f32 %v506, %v570
    %v572 = vmul.f32 %v510, %v570
    %v573 = vmul.f32 %v514, %v570
    %v574 = vmul.f32 %v518, %v570
    %v575 = vmul.f32 %v522, %v570
    %v576 = vmul.f32 %v526, %v570
    %v577 = vmul.f32 %v530, %v570
    %v578 = vmul.f32 %v534, %v570
    %v579 = vmul.f32 %v538, %v570
    %v580 = vmul.f32 %v542, %v570
    %v581 = vmul.f32 %v546, %v570
    %v582 = vmul.f32 %v550, %v570
    %v583 = vmul.f32 %v554, %v570
    %v584 = vmul.f32 %v558, %v570
    %v585 = vmul.f32 %v562, %v570
    %v586 = vmul.f32 %v566, %v570
    %v587 = vadd.f32 %v487, %v571
    %v588 = vadd.f32 %v488, %v572
    %v589 = vadd.f32 %v489, %v573
    %v590 = vadd.f32 %v490, %v574
    %v591 = vadd.f32 %v491, %v575
    %v592 = vadd.f32 %v492, %v576
    %v593 = vadd.f32 %v493, %v577
    %v594 = vadd.f32 %v494, %v578
    %v595 = vadd.f32 %v495, %v579
    %v596 = vadd.f32 %v496, %v580
    %v597 = vadd.f32 %v497, %v581
    %v598 = vadd.f32 %v498, %v582
    %v599 = vadd.f32 %v499, %v583
    %v600 = vadd.f32 %v500, %v584
    %v601 = vadd.f32 %v501, %v585
    %v602 = vadd.f32 %v502, %v586
    %s604 = sor.u32 256, 2
    %605 = vbcast.lane.b32.xlu0 %v382, %s604
    %v606 = vpop.permute.xlu0 %605
    %s608 = sor.u32 256, 10
    %609 = vbcast.lane.b32.xlu0 %v382, %s608
    %v610 = vpop.permute.xlu0 %609
    %s612 = sor.u32 256, 2
    %613 = vbcast.lane.b32.xlu0 %v393, %s612
    %v614 = vpop.permute.xlu0 %613
    %s616 = sor.u32 256, 10
    %617 = vbcast.lane.b32.xlu0 %v393, %s616
    %v618 = vpop.permute.xlu0 %617
    %s620 = sor.u32 256, 2
    %621 = vbcast.lane.b32.xlu0 %v404, %s620
    %v622 = vpop.permute.xlu0 %621
    %s624 = sor.u32 256, 10
    %625 = vbcast.lane.b32.xlu0 %v404, %s624
    %v626 = vpop.permute.xlu0 %625
    %s628 = sor.u32 256, 2
    %629 = vbcast.lane.b32.xlu0 %v415, %s628
    %v630 = vpop.permute.xlu0 %629
    %s632 = sor.u32 256, 10
    %633 = vbcast.lane.b32.xlu0 %v415, %s632
    %v634 = vpop.permute.xlu0 %633
    %s636 = sor.u32 256, 2
    %637 = vbcast.lane.b32.xlu0 %v426, %s636
    %v638 = vpop.permute.xlu0 %637
    %s640 = sor.u32 256, 10
    %641 = vbcast.lane.b32.xlu0 %v426, %s640
    %v642 = vpop.permute.xlu0 %641
    %s644 = sor.u32 256, 2
    %645 = vbcast.lane.b32.xlu0 %v437, %s644
    %v646 = vpop.permute.xlu0 %645
    %s648 = sor.u32 256, 10
    %649 = vbcast.lane.b32.xlu0 %v437, %s648
    %v650 = vpop.permute.xlu0 %649
    %s652 = sor.u32 256, 2
    %653 = vbcast.lane.b32.xlu0 %v448, %s652
    %v654 = vpop.permute.xlu0 %653
    %s656 = sor.u32 256, 10
    %657 = vbcast.lane.b32.xlu0 %v448, %s656
    %v658 = vpop.permute.xlu0 %657
    %s660 = sor.u32 256, 2
    %661 = vbcast.lane.b32.xlu0 %v459, %s660
    %v662 = vpop.permute.xlu0 %661
    %s664 = sor.u32 256, 10
    %665 = vbcast.lane.b32.xlu0 %v459, %s664
    %v666 = vpop.permute.xlu0 %665
    %v667 = vlaneseq
    %v668 = vshrl.u32 %v667, 7
    %v669 = vsub.s32 2, %v668
    %v670 = vrot.slane %v67, %v669
    %v671 = vmul.f32 %v606, %v670
    %v672 = vmul.f32 %v610, %v670
    %v673 = vmul.f32 %v614, %v670
    %v674 = vmul.f32 %v618, %v670
    %v675 = vmul.f32 %v622, %v670
    %v676 = vmul.f32 %v626, %v670
    %v677 = vmul.f32 %v630, %v670
    %v678 = vmul.f32 %v634, %v670
    %v679 = vmul.f32 %v638, %v670
    %v680 = vmul.f32 %v642, %v670
    %v681 = vmul.f32 %v646, %v670
    %v682 = vmul.f32 %v650, %v670
    %v683 = vmul.f32 %v654, %v670
    %v684 = vmul.f32 %v658, %v670
    %v685 = vmul.f32 %v662, %v670
    %v686 = vmul.f32 %v666, %v670
    %v687 = vadd.f32 %v587, %v671
    %v688 = vadd.f32 %v588, %v672
    %v689 = vadd.f32 %v589, %v673
    %v690 = vadd.f32 %v590, %v674
    %v691 = vadd.f32 %v591, %v675
    %v692 = vadd.f32 %v592, %v676
    %v693 = vadd.f32 %v593, %v677
    %v694 = vadd.f32 %v594, %v678
    %v695 = vadd.f32 %v595, %v679
    %v696 = vadd.f32 %v596, %v680
    %v697 = vadd.f32 %v597, %v681
    %v698 = vadd.f32 %v598, %v682
    %v699 = vadd.f32 %v599, %v683
    %v700 = vadd.f32 %v600, %v684
    %v701 = vadd.f32 %v601, %v685
    %v702 = vadd.f32 %v602, %v686
    %vm703 = vcmask 64512
    %v704 = vsel %vm703, %v687, -inf
    %vm705 = vcmask 62464
    %v706 = vsel %vm705, %v688, -inf
    %v707 = vmax.f32 %v704, %v706
    %v708 = vrot.slane %v707, 4
    %v709 = vmax.f32 %v707, %v708
    %v710 = vrot.slane %v709, 2
    %v711 = vmax.f32 %v709, %v710
    %v712 = vrot.slane %v711, 1
    %v713 = vmax.f32 %v711, %v712
    %v714 = vsel %vm703, %v689, -inf
    %v715 = vsel %vm705, %v690, -inf
    %v716 = vmax.f32 %v714, %v715
    %v717 = vrot.slane %v716, 4
    %v718 = vmax.f32 %v716, %v717
    %v719 = vrot.slane %v718, 2
    %v720 = vmax.f32 %v718, %v719
    %v721 = vrot.slane %v720, 1
    %v722 = vmax.f32 %v720, %v721
    %v723 = vsel %vm703, %v691, -inf
    %v724 = vsel %vm705, %v692, -inf
    %v725 = vmax.f32 %v723, %v724
    %v726 = vrot.slane %v725, 4
    %v727 = vmax.f32 %v725, %v726
    %v728 = vrot.slane %v727, 2
    %v729 = vmax.f32 %v727, %v728
    %v730 = vrot.slane %v729, 1
    %v731 = vmax.f32 %v729, %v730
    %v732 = vsel %vm703, %v693, -inf
    %v733 = vsel %vm705, %v694, -inf
    %v734 = vmax.f32 %v732, %v733
    %v735 = vrot.slane %v734, 4
    %v736 = vmax.f32 %v734, %v735
    %v737 = vrot.slane %v736, 2
    %v738 = vmax.f32 %v736, %v737
    %v739 = vrot.slane %v738, 1
    %v740 = vmax.f32 %v738, %v739
    %v741 = vsel %vm703, %v695, -inf
    %v742 = vsel %vm705, %v696, -inf
    %v743 = vmax.f32 %v741, %v742
    %v744 = vrot.slane %v743, 4
    %v745 = vmax.f32 %v743, %v744
    %v746 = vrot.slane %v745, 2
    %v747 = vmax.f32 %v745, %v746
    %v748 = vrot.slane %v747, 1
    %v749 = vmax.f32 %v747, %v748
    %v750 = vsel %vm703, %v697, -inf
    %v751 = vsel %vm705, %v698, -inf
    %v752 = vmax.f32 %v750, %v751
    %v753 = vrot.slane %v752, 4
    %v754 = vmax.f32 %v752, %v753
    %v755 = vrot.slane %v754, 2
    %v756 = vmax.f32 %v754, %v755
    %v757 = vrot.slane %v756, 1
    %v758 = vmax.f32 %v756, %v757
    %v759 = vsel %vm703, %v699, -inf
    %v760 = vsel %vm705, %v700, -inf
    %v761 = vmax.f32 %v759, %v760
    %v762 = vrot.slane %v761, 4
    %v763 = vmax.f32 %v761, %v762
    %v764 = vrot.slane %v763, 2
    %v765 = vmax.f32 %v763, %v764
    %v766 = vrot.slane %v765, 1
    %v767 = vmax.f32 %v765, %v766
    %v768 = vsel %vm703, %v701, -inf
    %v769 = vsel %vm705, %v702, -inf
    %v770 = vmax.f32 %v768, %v769
    %v771 = vrot.slane %v770, 4
    %v772 = vmax.f32 %v770, %v771
    %v773 = vrot.slane %v772, 2
    %v774 = vmax.f32 %v772, %v773
    %v775 = vrot.slane %v774, 1
    %v776 = vmax.f32 %v774, %v775
    %v777 = vld [vmem:[%s2] sm:$0x1]
    %v779 = vlaneseq
    %v780 = vshrl.u32 %v779, 7
    %v781 = vsub.s32 0, %v780
    %v782 = vrot.slane %v777, %v781
    %v784 = vadd.f32 %v713, %v782
    %v785 = vadd.f32 %v722, %v782
    %v786 = vadd.f32 %v731, %v782
    %v787 = vadd.f32 %v740, %v782
    %v788 = vadd.f32 %v749, %v782
    %v789 = vadd.f32 %v758, %v782
    %v790 = vadd.f32 %v767, %v782
    %v791 = vadd.f32 %v776, %v782
    %v792 = vmax.f32 %v784, 0.0
    %v793 = vmax.f32 %v785, 0.0
    %v794 = vmax.f32 %v786, 0.0
    %v795 = vmax.f32 %v787, 0.0
    %v796 = vmax.f32 %v788, 0.0
    %v797 = vmax.f32 %v789, 0.0
    %v798 = vmax.f32 %v790, 0.0
    %v799 = vmax.f32 %v791, 0.0
    %v800 = vld [vmem:[%s3] sm:$0xff]
    %v801 = vld [vmem:[%s4] sm:$0x1]
    %v803 = vlaneseq
    %v804 = vshrl.u32 %v803, 7
    %v805 = vsub.s32 0, %v804
    %v806 = vrot.slane %v801, %v805
    %v816 = vrot.slane %v793, 7
    %vm817 = vcmask 1041409
    %v818 = vsel %vm817, %v816, %v792
    %v819 = vrot.slane %v794, 6
    %vm820 = vcmask 1042434
    %v821 = vsel %vm820, %v819, %v818
    %v822 = vrot.slane %v795, 5
    %vm823 = vcmask 1043459
    %v824 = vsel %vm823, %v822, %v821
    %v825 = vrot.slane %v796, 4
    %vm826 = vcmask 1044484
    %v827 = vsel %vm826, %v825, %v824
    %v828 = vrot.slane %v797, 3
    %vm829 = vcmask 1045509
    %v830 = vsel %vm829, %v828, %v827
    %v831 = vrot.slane %v798, 2
    %vm832 = vcmask 1046534
    %v833 = vsel %vm832, %v831, %v830
    %v834 = vrot.slane %v799, 1
    %vm835 = vcmask 1047559
    %v836 = vsel %vm835, %v834, %v833
    %v837 = vsel %vm703, %v836, 0
    %839 = vmatprep.subr.mxu0 0.0
    %840 = vmatpush1.msra.mxu0 %v800
    %841 = vmatprep.subr.mxu0 0.0
    %842 = vmatpush1.msra.mxu0 0.0
    %843 = vmatprep.subr.mxu0 0.0
    %844 = vmatpush1.msra.mxu0 0.0
    %845 = vmatprep.subr.mxu0 0.0
    %846 = vmatpush1.msra.mxu0 0.0
    %847 = vmatprep.subr.mxu0 0.0
    %848 = vmatpush1.msra.mxu0 0.0
    %849 = vmatprep.subr.mxu0 0.0
    %850 = vmatpush1.msra.mxu0 0.0
    %851 = vmatprep.subr.mxu0 0.0
    %852 = vmatpush1.msra.mxu0 0.0
    %853 = vmatprep.subr.mxu0 0.0
    %854 = vmatpush1.msra.mxu0 0.0
    %855 = vmatprep.subr.mxu0 0.0
    %856 = vmatpush1.msra.mxu0 0.0
    %857 = vmatprep.subr.mxu0 0.0
    %858 = vmatpush1.msra.mxu0 0.0
    %859 = vmatprep.subr.mxu0 0.0
    %860 = vmatpush1.msra.mxu0 0.0
    %861 = vmatprep.subr.mxu0 0.0
    %862 = vmatpush1.msra.mxu0 0.0
    %863 = vmatprep.subr.mxu0 0.0
    %864 = vmatpush1.msra.mxu0 0.0
    %865 = vmatprep.subr.mxu0 0.0
    %866 = vmatpush1.msra.mxu0 0.0
    %867 = vmatprep.subr.mxu0 0.0
    %868 = vmatpush1.msra.mxu0 0.0
    %869 = vmatprep.subr.mxu0 0.0
    %870 = vmatpush1.msra.mxu0 0.0
    %871 = vmatprep.subr.mxu0 0.0
    %872 = vmatpush1.msra.mxu0 0.0
    %873 = vmatprep.subr.mxu0 0.0
    %874 = vmatpush1.msra.mxu0 0.0
    %875 = vmatprep.subr.mxu0 0.0
    %876 = vmatpush1.msra.mxu0 0.0
    %877 = vmatprep.subr.mxu0 0.0
    %878 = vmatpush1.msra.mxu0 0.0
    %879 = vmatprep.subr.mxu0 0.0
    %880 = vmatpush1.msra.mxu0 0.0
    %881 = vmatprep.subr.mxu0 0.0
    %882 = vmatpush1.msra.mxu0 0.0
    %883 = vmatprep.subr.mxu0 0.0
    %884 = vmatpush1.msra.mxu0 0.0
    %885 = vmatprep.subr.mxu0 0.0
    %886 = vmatpush1.msra.mxu0 0.0
    %887 = vmatprep.subr.mxu0 0.0
    %888 = vmatpush1.msra.mxu0 0.0
    %889 = vmatprep.subr.mxu0 0.0
    %890 = vmatpush1.msra.mxu0 0.0
    %891 = vmatprep.subr.mxu0 0.0
    %892 = vmatpush1.msra.mxu0 0.0
    %893 = vmatprep.subr.mxu0 0.0
    %894 = vmatpush1.msra.mxu0 0.0
    %895 = vmatprep.subr.mxu0 0.0
    %896 = vmatpush1.msra.mxu0 0.0
    %897 = vmatprep.subr.mxu0 0.0
    %898 = vmatpush1.msra.mxu0 0.0
    %899 = vmatprep.subr.mxu0 0.0
    %900 = vmatpush1.msra.mxu0 0.0
    %901 = vmatprep.subr.mxu0 0.0
    %902 = vmatpush1.msra.mxu0 0.0
    %903 = vmatprep.mubr.f32.mxu0 0.0
    %904 = vmatmul.mubr.f32.gmra.mrb[0].mxu0 %v837
    %v905 = vpop.f32.mrb[0].mxu0
    %v906 = vadd.f32 %v806, %v905
    %v907 = vpop.f32.mrb[0].mxu0
    %908 = vdwg.mxu0
    %v909 = vmax.f32 %v906, 0.0
    %911 = vrot.lane.b32.xlu0 %v909, 127
    %v912 = vpop.permute.xlu0 %911
    %v914 = vmax.f32 %v909, %v912
    %v915 = vld [vmem:[%s5] sm:$0xff]
    %v916 = vld [vmem:[%s5 + $0x8] sm:$0xff]
    %v917 = vld [vmem:[%s5 + $0x10] sm:$0xff]
    %v918 = vld [vmem:[%s5 + $0x18] sm:$0x7f]
    %v919 = vld [vmem:[#allocation2] sm:$0x1]
    %v921 = vlaneseq
    %v922 = vshrl.u32 %v921, 7
    %v923 = vsub.s32 0, %v922
    %v924 = vrot.slane %v919, %v923
    %vm926 = vcmask 252928
    %v928 = vsel %vm926, %v914, 0
    %vm930 = vcmask 1046528
    %v932 = vsel %vm930, %v918, 0
    %934 = vmatprep.subr.mxu0 0.0
    %935 = vmatpush1.msra.mxu0 %v915
    %936 = vmatprep.subr.mxu0 0.0
    %937 = vmatpush1.msra.mxu0 %v916
    %938 = vmatprep.subr.mxu0 0.0
    %939 = vmatpush1.msra.mxu0 %v917
    %940 = vmatprep.subr.mxu0 0.0
    %941 = vmatpush1.msra.mxu0 %v932
    %942 = vmatprep.subr.mxu0 0.0
    %943 = vmatpush1.msra.mxu0 0.0
    %944 = vmatprep.subr.mxu0 0.0
    %945 = vmatpush1.msra.mxu0 0.0
    %946 = vmatprep.subr.mxu0 0.0
    %947 = vmatpush1.msra.mxu0 0.0
    %948 = vmatprep.subr.mxu0 0.0
    %949 = vmatpush1.msra.mxu0 0.0
    %950 = vmatprep.subr.mxu0 0.0
    %951 = vmatpush1.msra.mxu0 0.0
    %952 = vmatprep.subr.mxu0 0.0
    %953 = vmatpush1.msra.mxu0 0.0
    %954 = vmatprep.subr.mxu0 0.0
    %955 = vmatpush1.msra.mxu0 0.0
    %956 = vmatprep.subr.mxu0 0.0
    %957 = vmatpush1.msra.mxu0 0.0
    %958 = vmatprep.subr.mxu0 0.0
    %959 = vmatpush1.msra.mxu0 0.0
    %960 = vmatprep.subr.mxu0 0.0
    %961 = vmatpush1.msra.mxu0 0.0
    %962 = vmatprep.subr.mxu0 0.0
    %963 = vmatpush1.msra.mxu0 0.0
    %964 = vmatprep.subr.mxu0 0.0
    %965 = vmatpush1.msra.mxu0 0.0
    %966 = vmatprep.subr.mxu0 0.0
    %967 = vmatpush1.msra.mxu0 0.0
    %968 = vmatprep.subr.mxu0 0.0
    %969 = vmatpush1.msra.mxu0 0.0
    %970 = vmatprep.subr.mxu0 0.0
    %971 = vmatpush1.msra.mxu0 0.0
    %972 = vmatprep.subr.mxu0 0.0
    %973 = vmatpush1.msra.mxu0 0.0
    %974 = vmatprep.subr.mxu0 0.0
    %975 = vmatpush1.msra.mxu0 0.0
    %976 = vmatprep.subr.mxu0 0.0
    %977 = vmatpush1.msra.mxu0 0.0
    %978 = vmatprep.subr.mxu0 0.0
    %979 = vmatpush1.msra.mxu0 0.0
    %980 = vmatprep.subr.mxu0 0.0
    %981 = vmatpush1.msra.mxu0 0.0
    %982 = vmatprep.subr.mxu0 0.0
    %983 = vmatpush1.msra.mxu0 0.0
    %984 = vmatprep.subr.mxu0 0.0
    %985 = vmatpush1.msra.mxu0 0.0
    %986 = vmatprep.subr.mxu0 0.0
    %987 = vmatpush1.msra.mxu0 0.0
    %988 = vmatprep.subr.mxu0 0.0
    %989 = vmatpush1.msra.mxu0 0.0
    %990 = vmatprep.subr.mxu0 0.0
    %991 = vmatpush1.msra.mxu0 0.0
    %992 = vmatprep.subr.mxu0 0.0
    %993 = vmatpush1.msra.mxu0 0.0
    %994 = vmatprep.subr.mxu0 0.0
    %995 = vmatpush1.msra.mxu0 0.0
    %996 = vmatprep.subr.mxu0 0.0
    %997 = vmatpush1.msra.mxu0 0.0
    %998 = vmatprep.mubr.f32.mxu0 0.0
    %999 = vmatmul.mubr.f32.gmra.mrb[0].mxu0 %v928
    %v1000 = vpop.f32.mrb[0].mxu0
    %v1001 = vadd.f32 %v924, %v1000
    %v1002 = vpop.f32.mrb[0].mxu0
    %1003 = vdwg.mxu0
    %v1004 = vmax.f32 %v1001, 0.0
    %v1005 = vld [vmem:[%s7] sm:$0xff]
    %v1006 = vld [vmem:[%s7 + $0x8] sm:$0xff]
    %v1007 = vld [vmem:[%s7 + $0x10] sm:$0xff]
    %v1008 = vld [vmem:[%s7 + $0x18] sm:$0xff]
    %v1009 = vld [vmem:[%s8] sm:$0xff]
    %v1010 = vld [vmem:[%s8 + $0x8] sm:$0xff]
    %v1011 = vld [vmem:[%s9] sm:$0x1]
    %v1013 = vlaneseq
    %v1014 = vshrl.u32 %v1013, 7
    %v1015 = vsub.s32 0, %v1014
    %v1016 = vrot.slane %v1011, %v1015
    %vm1018 = vcmask 261120
    %v1020 = vsel %vm1018, %v1004, 0
    %1022 = vmatprep.subr.mxu0 0.0
    %1023 = vmatpush1.msra.mxu0 %v1005
    %1024 = vmatprep.subr.mxu0 0.0
    %1025 = vmatpush1.msra.mxu0 %v1006
    %1026 = vmatprep.subr.mxu0 0.0
    %1027 = vmatpush1.msra.mxu0 %v1007
    %1028 = vmatprep.subr.mxu0 0.0
    %1029 = vmatpush1.msra.mxu0 %v1008
    %1030 = vmatprep.subr.mxu0 0.0
    %1031 = vmatpush1.msra.mxu0 0.0
    %1032 = vmatprep.subr.mxu0 0.0
    %1033 = vmatpush1.msra.mxu0 0.0
    %1034 = vmatprep.subr.mxu0 0.0
    %1035 = vmatpush1.msra.mxu0 0.0
    %1036 = vmatprep.subr.mxu0 0.0
    %1037 = vmatpush1.msra.mxu0 0.0
    %1038 = vmatprep.subr.mxu0 0.0
    %1039 = vmatpush1.msra.mxu0 0.0
    %1040 = vmatprep.subr.mxu0 0.0
    %1041 = vmatpush1.msra.mxu0 0.0
    %1042 = vmatprep.subr.mxu0 0.0
    %1043 = vmatpush1.msra.mxu0 0.0
    %1044 = vmatprep.subr.mxu0 0.0
    %1045 = vmatpush1.msra.mxu0 0.0
    %1046 = vmatprep.subr.mxu0 0.0
    %1047 = vmatpush1.msra.mxu0 0.0
    %1048 = vmatprep.subr.mxu0 0.0
    %1049 = vmatpush1.msra.mxu0 0.0
    %1050 = vmatprep.subr.mxu0 0.0
    %1051 = vmatpush1.msra.mxu0 0.0
    %1052 = vmatprep.subr.mxu0 0.0
    %1053 = vmatpush1.msra.mxu0 0.0
    %1054 = vmatprep.subr.mxu0 0.0
    %1055 = vmatpush1.msra.mxu0 0.0
    %1056 = vmatprep.subr.mxu0 0.0
    %1057 = vmatpush1.msra.mxu0 0.0
    %1058 = vmatprep.subr.mxu0 0.0
    %1059 = vmatpush1.msra.mxu0 0.0
    %1060 = vmatprep.subr.mxu0 0.0
    %1061 = vmatpush1.msra.mxu0 0.0
    %1062 = vmatprep.subr.mxu0 0.0
    %1063 = vmatpush1.msra.mxu0 0.0
    %1064 = vmatprep.subr.mxu0 0.0
    %1065 = vmatpush1.msra.mxu0 0.0
    %1066 = vmatprep.subr.mxu0 0.0
    %1067 = vmatpush1.msra.mxu0 0.0
    %1068 = vmatprep.subr.mxu0 0.0
    %1069 = vmatpush1.msra.mxu0 0.0
    %1070 = vmatprep.subr.mxu0 0.0
    %1071 = vmatpush1.msra.mxu0 0.0
    %1072 = vmatprep.subr.mxu0 0.0
    %1073 = vmatpush1.msra.mxu0 0.0
    %1074 = vmatprep.subr.mxu0 0.0
    %1075 = vmatpush1.msra.mxu0 0.0
    %1076 = vmatprep.subr.mxu0 0.0
    %1077 = vmatpush1.msra.mxu0 0.0
    %1078 = vmatprep.subr.mxu0 0.0
    %1079 = vmatpush1.msra.mxu0 0.0
    %1080 = vmatprep.subr.mxu0 0.0
    %1081 = vmatpush1.msra.mxu0 0.0
    %1082 = vmatprep.subr.mxu0 0.0
    %1083 = vmatpush1.msra.mxu0 0.0
    %1084 = vmatprep.subr.mxu0 0.0
    %1085 = vmatpush1.msra.mxu0 0.0
    %1086 = vmatprep.mubr.f32.mxu0 0.0
    %1087 = vmatmul.mubr.f32.gmra.mrb[0].mxu0 %v1020
    %v1088 = vpop.f32.mrb[0].mxu0
    %v1089 = vadd.f32 %v1016, %v1088
    %v1090 = vpop.f32.mrb[0].mxu0
    %1091 = vdwg.mxu0
    %vm1092 = vcmask 130048
    %v1094 = vsel %vm1092, 0.0, 0
    %1096 = vmatprep.subr.mxu0 0.0
    %1097 = vmatpush1.msra.mxu0 %v1009
    %1098 = vmatprep.subr.mxu0 0.0
    %1099 = vmatpush1.msra.mxu0 %v1010
    %1100 = vmatprep.subr.mxu0 0.0
    %1101 = vmatpush1.msra.mxu0 0.0
    %1102 = vmatprep.subr.mxu0 0.0
    %1103 = vmatpush1.msra.mxu0 0.0
    %1104 = vmatprep.subr.mxu0 0.0
    %1105 = vmatpush1.msra.mxu0 0.0
    %1106 = vmatprep.subr.mxu0 0.0
    %1107 = vmatpush1.msra.mxu0 0.0
    %1108 = vmatprep.subr.mxu0 0.0
    %1109 = vmatpush1.msra.mxu0 0.0
    %1110 = vmatprep.subr.mxu0 0.0
    %1111 = vmatpush1.msra.mxu0 0.0
    %1112 = vmatprep.subr.mxu0 0.0
    %1113 = vmatpush1.msra.mxu0 0.0
    %1114 = vmatprep.subr.mxu0 0.0
    %1115 = vmatpush1.msra.mxu0 0.0
    %1116 = vmatprep.subr.mxu0 0.0
    %1117 = vmatpush1.msra.mxu0 0.0
    %1118 = vmatprep.subr.mxu0 0.0
    %1119 = vmatpush1.msra.mxu0 0.0
    %1120 = vmatprep.subr.mxu0 0.0
    %1121 = vmatpush1.msra.mxu0 0.0
    %1122 = vmatprep.subr.mxu0 0.0
    %1123 = vmatpush1.msra.mxu0 0.0
    %1124 = vmatprep.subr.mxu0 0.0
    %1125 = vmatpush1.msra.mxu0 0.0
    %1126 = vmatprep.subr.mxu0 0.0
    %1127 = vmatpush1.msra.mxu0 0.0
    %1128 = vmatprep.subr.mxu0 0.0
    %1129 = vmatpush1.msra.mxu0 0.0
    %1130 = vmatprep.subr.mxu0 0.0
    %1131 = vmatpush1.msra.mxu0 0.0
    %1132 = vmatprep.subr.mxu0 0.0
    %1133 = vmatpush1.msra.mxu0 0.0
    %1134 = vmatprep.subr.mxu0 0.0
    %1135 = vmatpush1.msra.mxu0 0.0
    %1136 = vmatprep.subr.mxu0 0.0
    %1137 = vmatpush1.msra.mxu0 0.0
    %1138 = vmatprep.subr.mxu0 0.0
    %1139 = vmatpush1.msra.mxu0 0.0
    %1140 = vmatprep.subr.mxu0 0.0
    %1141 = vmatpush1.msra.mxu0 0.0
    %1142 = vmatprep.subr.mxu0 0.0
    %1143 = vmatpush1.msra.mxu0 0.0
    %1144 = vmatprep.subr.mxu0 0.0
    %1145 = vmatpush1.msra.mxu0 0.0
    %1146 = vmatprep.subr.mxu0 0.0
    %1147 = vmatpush1.msra.mxu0 0.0
    %1148 = vmatprep.subr.mxu0 0.0
    %1149 = vmatpush1.msra.mxu0 0.0
    %1150 = vmatprep.subr.mxu0 0.0
    %1151 = vmatpush1.msra.mxu0 0.0
    %1152 = vmatprep.subr.mxu0 0.0
    %1153 = vmatpush1.msra.mxu0 0.0
    %1154 = vmatprep.subr.mxu0 0.0
    %1155 = vmatpush1.msra.mxu0 0.0
    %1156 = vmatprep.subr.mxu0 0.0
    %1157 = vmatpush1.msra.mxu0 0.0
    %1158 = vmatprep.subr.mxu0 0.0
    %1159 = vmatpush1.msra.mxu0 0.0
    %1160 = vmatprep.mubr.f32.mxu0 0.0
    %1161 = vmatmul.mubr.f32.gmra.mrb[0].mxu0 %v1094
    %v1162 = vpop.f32.mrb[0].mxu0
    %v1163 = vadd.f32 0.0, %v1162
    %v1164 = vpop.f32.mrb[0].mxu0
    %1165 = vdwg.mxu0
    %v1166 = vadd.f32 %v1089, %v1163
    %v1167 = vxor.u32 %v1166, 2147483648
    %v1168 = vmul.f32 %v1167, 1.442695
    %v1169 = vpow.pop %v1168
    %v1170 = vadd.f32 %v1169, 1.0
    %v1171 = vrcp.pop %v1170
    %v1172 = vmul.f32 1.0, %v1171
    %v1173 = vtanh.pop %v1166
    %v1174 = vmul.f32 %v1172, 0.0
    %1176 = vrot.lane.b32.xlu0 %v1173, 80
    %v1177 = vpop.permute.xlu0 %1176
    %v1179 = vmul.f32 %v1172, %v1177
    %1181 = vrot.lane.b32.xlu0 %v1179, 16
    %v1182 = vpop.permute.xlu0 %1181
    %v1184 = vadd.f32 %v1174, %v1182
    %v1185 = vtanh.pop %v1184
    %1187 = vrot.lane.b32.xlu0 %v1185, 16
    %v1188 = vpop.permute.xlu0 %1187
    %v1190 = vmul.f32 %v1172, %v1188
    %1192 = vrot.lane.b32.xlu0 %v1190, 96
    %v1193 = vpop.permute.xlu0 %1192
    %v1194 = vsel %vm1092, %v1193, 0
    %1196 = vmatprep.subr.mxu0 0.0
    %1197 = vmatpush1.msra.mxu0 %v1009
    %1198 = vmatprep.subr.mxu0 0.0
    %1199 = vmatpush1.msra.mxu0 %v1010
    %1200 = vmatprep.subr.mxu0 0.0
    %1201 = vmatpush1.msra.mxu0 0.0
    %1202 = vmatprep.subr.mxu0 0.0
    %1203 = vmatpush1.msra.mxu0 0.0
    %1204 = vmatprep.subr.mxu0 0.0
    %1205 = vmatpush1.msra.mxu0 0.0
    %1206 = vmatprep.subr.mxu0 0.0
    %1207 = vmatpush1.msra.mxu0 0.0
    %1208 = vmatprep.subr.mxu0 0.0
    %1209 = vmatpush1.msra.mxu0 0.0
    %1210 = vmatprep.subr.mxu0 0.0
    %1211 = vmatpush1.msra.mxu0 0.0
    %1212 = vmatprep.subr.mxu0 0.0
    %1213 = vmatpush1.msra.mxu0 0.0
    %1214 = vmatprep.subr.mxu0 0.0
    %1215 = vmatpush1.msra.mxu0 0.0
    %1216 = vmatprep.subr.mxu0 0.0
    %1217 = vmatpush1.msra.mxu0 0.0
    %1218 = vmatprep.subr.mxu0 0.0
    %1219 = vmatpush1.msra.mxu0 0.0
    %1220 = vmatprep.subr.mxu0 0.0
    %1221 = vmatpush1.msra.mxu0 0.0
    %1222 = vmatprep.subr.mxu0 0.0
    %1223 = vmatpush1.msra.mxu0 0.0
    %1224 = vmatprep.subr.mxu0 0.0
    %1225 = vmatpush1.msra.mxu0 0.0
    %1226 = vmatprep.subr.mxu0 0.0
    %1227 = vmatpush1.msra.mxu0 0.0
    %1228 = vmatprep.subr.mxu0 0.0
    %1229 = vmatpush1.msra.mxu0 0.0
    %1230 = vmatprep.subr.mxu0 0.0
    %1231 = vmatpush1.msra.mxu0 0.0
    %1232 = vmatprep.subr.mxu0 0.0
    %1233 = vmatpush1.msra.mxu0 0.0
    %1234 = vmatprep.subr.mxu0 0.0
    %1235 = vmatpush1.msra.mxu0 0.0
    %1236 = vmatprep.subr.mxu0 0.0
    %1237 = vmatpush1.msra.mxu0 0.0
    %1238 = vmatprep.subr.mxu0 0.0
    %1239 = vmatpush1.msra.mxu0 0.0
    %1240 = vmatprep.subr.mxu0 0.0
    %1241 = vmatpush1.msra.mxu0 0.0
    %1242 = vmatprep.subr.mxu0 0.0
    %1243 = vmatpush1.msra.mxu0 0.0
    %1244 = vmatprep.subr.mxu0 0.0
    %1245 = vmatpush1.msra.mxu0 0.0
    %1246 = vmatprep.subr.mxu0 0.0
    %1247 = vmatpush1.msra.mxu0 0.0
    %1248 = vmatprep.subr.mxu0 0.0
    %1249 = vmatpush1.msra.mxu0 0.0
    %1250 = vmatprep.subr.mxu0 0.0
    %1251 = vmatpush1.msra.mxu0 0.0
    %1252 = vmatprep.subr.mxu0 0.0
    %1253 = vmatpush1.msra.mxu0 0.0
    %1254 = vmatprep.subr.mxu0 0.0
    %1255 = vmatpush1.msra.mxu0 0.0
    %1256 = vmatprep.subr.mxu0 0.0
    %1257 = vmatpush1.msra.mxu0 0.0
    %1258 = vmatprep.subr.mxu0 0.0
    %1259 = vmatpush1.msra.mxu0 0.0
    %1260 = vmatprep.mubr.f32.mxu0 0.0
    %1261 = vmatmul.mubr.f32.gmra.mrb[0].mxu0 %v1194
    %v1262 = vpop.f32.mrb[0].mxu0
    %v1263 = vadd.f32 0.0, %v1262
    %v1264 = vpop.f32.mrb[0].mxu0
    %1265 = vdwg.mxu0
    %v1267 = vrot.slane %v1263, 6
    %v1269 = vadd.f32 %v1089, %v1267
    %v1270 = vxor.u32 %v1269, 2147483648
    %v1271 = vmul.f32 %v1270, 1.442695
    %v1272 = vpow.pop %v1271
    %v1273 = vadd.f32 %v1272, 1.0
    %v1274 = vrcp.pop %v1273
    %v1275 = vmul.f32 1.0, %v1274
    %v1276 = vtanh.pop %v1269
    %v1278 = vrot.slane %v1184, 6
    %v1280 = vmul.f32 %v1275, %v1278
    %1282 = vrot.lane.b32.xlu0 %v1276, 80
    %v1283 = vpop.permute.xlu0 %1282
    %v1285 = vmul.f32 %v1275, %v1283
    %1287 = vrot.lane.b32.xlu0 %v1285, 16
    %v1288 = vpop.permute.xlu0 %1287
    %v1290 = vadd.f32 %v1280, %v1288
    %v1291 = vtanh.pop %v1290
    %1293 = vrot.lane.b32.xlu0 %v1291, 16
    %v1294 = vpop.permute.xlu0 %1293
    %v1296 = vmul.f32 %v1275, %v1294
    %v1298 = vrot.slane %v1296, 2
    %1299 = vrot.lane.b32.xlu0 %v1298, 96
    %v1300 = vpop.permute.xlu0 %1299
    %v1301 = vsel %vm1092, %v1300, 0
    %1303 = vmatprep.subr.mxu0 0.0
    %1304 = vmatpush1.msra.mxu0 %v1009
    %1305 = vmatprep.subr.mxu0 0.0
    %1306 = vmatpush1.msra.mxu0 %v1010
    %1307 = vmatprep.subr.mxu0 0.0
    %1308 = vmatpush1.msra.mxu0 0.0
    %1309 = vmatprep.subr.mxu0 0.0
    %1310 = vmatpush1.msra.mxu0 0.0
    %1311 = vmatprep.subr.mxu0 0.0
    %1312 = vmatpush1.msra.mxu0 0.0
    %1313 = vmatprep.subr.mxu0 0.0
    %1314 = vmatpush1.msra.mxu0 0.0
    %1315 = vmatprep.subr.mxu0 0.0
    %1316 = vmatpush1.msra.mxu0 0.0
    %1317 = vmatprep.subr.mxu0 0.0
    %1318 = vmatpush1.msra.mxu0 0.0
    %1319 = vmatprep.subr.mxu0 0.0
    %1320 = vmatpush1.msra.mxu0 0.0
    %1321 = vmatprep.subr.mxu0 0.0
    %1322 = vmatpush1.msra.mxu0 0.0
    %1323 = vmatprep.subr.mxu0 0.0
    %1324 = vmatpush1.msra.mxu0 0.0
    %1325 = vmatprep.subr.mxu0 0.0
    %1326 = vmatpush1.msra.mxu0 0.0
    %1327 = vmatprep.subr.mxu0 0.0
    %1328 = vmatpush1.msra.mxu0 0.0
    %1329 = vmatprep.subr.mxu0 0.0
    %1330 = vmatpush1.msra.mxu0 0.0
    %1331 = vmatprep.subr.mxu0 0.0
    %1332 = vmatpush1.msra.mxu0 0.0
    %1333 = vmatprep.subr.mxu0 0.0
    %1334 = vmatpush1.msra.mxu0 0.0
    %1335 = vmatprep.subr.mxu0 0.0
    %1336 = vmatpush1.msra.mxu0 0.0
    %1337 = vmatprep.subr.mxu0 0.0
    %1338 = vmatpush1.msra.mxu0 0.0
    %1339 = vmatprep.subr.mxu0 0.0
    %1340 = vmatpush1.msra.mxu0 0.0
    %1341 = vmatprep.subr.mxu0 0.0
    %1342 = vmatpush1.msra.mxu0 0.0
    %1343 = vmatprep.subr.mxu0 0.0
    %1344 = vmatpush1.msra.mxu0 0.0
    %1345 = vmatprep.subr.mxu0 0.0
    %1346 = vmatpush1.msra.mxu0 0.0
    %1347 = vmatprep.subr.mxu0 0.0
    %1348 = vmatpush1.msra.mxu0 0.0
    %1349 = vmatprep.subr.mxu0 0.0
    %1350 = vmatpush1.msra.mxu0 0.0
    %1351 = vmatprep.subr.mxu0 0.0
    %1352 = vmatpush1.msra.mxu0 0.0
    %1353 = vmatprep.subr.mxu0 0.0
    %1354 = vmatpush1.msra.mxu0 0.0
    %1355 = vmatprep.subr.mxu0 0.0
    %1356 = vmatpush1.msra.mxu0 0.0
    %1357 = vmatprep.subr.mxu0 0.0
    %1358 = vmatpush1.msra.mxu0 0.0
    %1359 = vmatprep.subr.mxu0 0.0
    %1360 = vmatpush1.msra.mxu0 0.0
    %1361 = vmatprep.subr.mxu0 0.0
    %1362 = vmatpush1.msra.mxu0 0.0
    %1363 = vmatprep.subr.mxu0 0.0
    %1364 = vmatpush1.msra.mxu0 0.0
    %1365 = vmatprep.subr.mxu0 0.0
    %1366 = vmatpush1.msra.mxu0 0.0
    %1367 = vmatprep.mubr.f32.mxu0 0.0
    %1368 = vmatmul.mubr.f32.gmra.mrb[0].mxu0 %v1301
    %v1369 = vpop.f32.mrb[0].mxu0
    %v1370 = vadd.f32 0.0, %v1369
    %v1371 = vpop.f32.mrb[0].mxu0
    %1372 = vdwg.mxu0
    %v1374 = vrot.slane %v1370, 4
    %v1376 = vadd.f32 %v1089, %v1374
    %v1377 = vxor.u32 %v1376, 2147483648
    %v1378 = vmul.f32 %v1377, 1.442695
    %v1379 = vpow.pop %v1378
    %v1380 = vadd.f32 %v1379, 1.0
    %v1381 = vrcp.pop %v1380
    %v1382 = vmul.f32 1.0, %v1381
    %v1383 = vtanh.pop %v1376
    %v1385 = vrot.slane %v1290, 6
    %v1387 = vmul.f32 %v1382, %v1385
    %1389 = vrot.lane.b32.xlu0 %v1383, 80
    %v1390 = vpop.permute.xlu0 %1389
    %v1392 = vmul.f32 %v1382, %v1390
    %1394 = vrot.lane.b32.xlu0 %v1392, 16
    %v1395 = vpop.permute.xlu0 %1394
    %v1397 = vadd.f32 %v1387, %v1395
    %v1398 = vtanh.pop %v1397
    %1400 = vrot.lane.b32.xlu0 %v1398, 16
    %v1401 = vpop.permute.xlu0 %1400
    %v1403 = vmul.f32 %v1382, %v1401
    %v1405 = vrot.slane %v1403, 4
    %1406 = vrot.lane.b32.xlu0 %v1405, 96
    %v1407 = vpop.permute.xlu0 %1406
    %v1408 = vsel %vm1092, %v1407, 0
    %1410 = vmatprep.subr.mxu0 0.0
    %1411 = vmatpush1.msra.mxu0 %v1009
    %1412 = vmatprep.subr.mxu0 0.0
    %1413 = vmatpush1.msra.mxu0 %v1010
    %1414 = vmatprep.subr.mxu0 0.0
    %1415 = vmatpush1.msra.mxu0 0.0
    %1416 = vmatprep.subr.mxu0 0.0
    %1417 = vmatpush1.msra.mxu0 0.0
    %1418 = vmatprep.subr.mxu0 0.0
    %1419 = vmatpush1.msra.mxu0 0.0
    %1420 = vmatprep.subr.mxu0 0.0
    %1421 = vmatpush1.msra.mxu0 0.0
    %1422 = vmatprep.subr.mxu0 0.0
    %1423 = vmatpush1.msra.mxu0 0.0
    %1424 = vmatprep.subr.mxu0 0.0
    %1425 = vmatpush1.msra.mxu0 0.0
    %1426 = vmatprep.subr.mxu0 0.0
    %1427 = vmatpush1.msra.mxu0 0.0
    %1428 = vmatprep.subr.mxu0 0.0
    %1429 = vmatpush1.msra.mxu0 0.0
    %1430 = vmatprep.subr.mxu0 0.0
    %1431 = vmatpush1.msra.mxu0 0.0
    %1432 = vmatprep.subr.mxu0 0.0
    %1433 = vmatpush1.msra.mxu0 0.0
    %1434 = vmatprep.subr.mxu0 0.0
    %1435 = vmatpush1.msra.mxu0 0.0
    %1436 = vmatprep.subr.mxu0 0.0
    %1437 = vmatpush1.msra.mxu0 0.0
    %1438 = vmatprep.subr.mxu0 0.0
    %1439 = vmatpush1.msra.mxu0 0.0
    %1440 = vmatprep.subr.mxu0 0.0
    %1441 = vmatpush1.msra.mxu0 0.0
    %1442 = vmatprep.subr.mxu0 0.0
    %1443 = vmatpush1.msra.mxu0 0.0
    %1444 = vmatprep.subr.mxu0 0.0
    %1445 = vmatpush1.msra.mxu0 0.0
    %1446 = vmatprep.subr.mxu0 0.0
    %1447 = vmatpush1.msra.mxu0 0.0
    %1448 = vmatprep.subr.mxu0 0.0
    %1449 = vmatpush1.msra.mxu0 0.0
    %1450 = vmatprep.subr.mxu0 0.0
    %1451 = vmatpush1.msra.mxu0 0.0
    %1452 = vmatprep.subr.mxu0 0.0
    %1453 = vmatpush1.msra.mxu0 0.0
    %1454 = vmatprep.subr.mxu0 0.0
    %1455 = vmatpush1.msra.mxu0 0.0
    %1456 = vmatprep.subr.mxu0 0.0
    %1457 = vmatpush1.msra.mxu0 0.0
    %1458 = vmatprep.subr.mxu0 0.0
    %1459 = vmatpush1.msra.mxu0 0.0
    %1460 = vmatprep.subr.mxu0 0.0
    %1461 = vmatpush1.msra.mxu0 0.0
    %1462 = vmatprep.subr.mxu0 0.0
    %1463 = vmatpush1.msra.mxu0 0.0
    %1464 = vmatprep.subr.mxu0 0.0
    %1465 = vmatpush1.msra.mxu0 0.0
    %1466 = vmatprep.subr.mxu0 0.0
    %1467 = vmatpush1.msra.mxu0 0.0
    %1468 = vmatprep.subr.mxu0 0.0
    %1469 = vmatpush1.msra.mxu0 0.0
    %1470 = vmatprep.subr.mxu0 0.0
    %1471 = vmatpush1.msra.mxu0 0.0
    %1472 = vmatprep.subr.mxu0 0.0
    %1473 = vmatpush1.msra.mxu0 0.0
    %1474 = vmatprep.mubr.f32.mxu0 0.0
    %1475 = vmatmul.mubr.f32.gmra.mrb[0].mxu0 %v1408
    %v1476 = vpop.f32.mrb[0].mxu0
    %v1477 = vadd.f32 0.0, %v1476
    %v1478 = vpop.f32.mrb[0].mxu0
    %1479 = vdwg.mxu0
    %v1481 = vrot.slane %v1477, 2
    %v1483 = vadd.f32 %v1089, %v1481
    %v1484 = vxor.u32 %v1483, 2147483648
    %v1485 = vmul.f32 %v1484, 1.442695
    %v1486 = vpow.pop %v1485
    %v1487 = vadd.f32 %v1486, 1.0
    %v1488 = vrcp.pop %v1487
    %v1489 = vmul.f32 1.0, %v1488
    %v1490 = vtanh.pop %v1483
    %v1492 = vrot.slane %v1397, 6
    %v1494 = vmul.f32 %v1489, %v1492
    %1496 = vrot.lane.b32.xlu0 %v1490, 80
    %v1497 = vpop.permute.xlu0 %1496
    %v1499 = vmul.f32 %v1489, %v1497
    %1501 = vrot.lane.b32.xlu0 %v1499, 16
    %v1502 = vpop.permute.xlu0 %1501
    %v1504 = vadd.f32 %v1494, %v1502
    %v1505 = vtanh.pop %v1504
    %1507 = vrot.lane.b32.xlu0 %v1505, 16
    %v1508 = vpop.permute.xlu0 %1507
    %v1510 = vmul.f32 %v1489, %v1508
    %v1511 = vld [vmem:[%s10] sm:$0xff]
    %v1512 = vld [vmem:[%s10 + $0x8] sm:$0xff]
    %v1513 = vld [vmem:[#allocation5] sm:$0x1]
    %v1515 = vlaneseq
    %v1516 = vshrl.u32 %v1515, 7
    %v1517 = vsub.s32 0, %v1516
    %v1518 = vrot.slane %v1513, %v1517
    %v1521 = vrot.slane %v1510, 6
    %1522 = vrot.lane.b32.xlu0 %v1521, 96
    %v1523 = vpop.permute.xlu0 %1522
    %v1524 = vsel %vm1092, %v1523, 0
    %1526 = vmatprep.subr.mxu0 0.0
    %1527 = vmatpush1.msra.mxu0 %v1511
    %1528 = vmatprep.subr.mxu0 0.0
    %1529 = vmatpush1.msra.mxu0 %v1512
    %1530 = vmatprep.subr.mxu0 0.0
    %1531 = vmatpush1.msra.mxu0 0.0
    %1532 = vmatprep.subr.mxu0 0.0
    %1533 = vmatpush1.msra.mxu0 0.0
    %1534 = vmatprep.subr.mxu0 0.0
    %1535 = vmatpush1.msra.mxu0 0.0
    %1536 = vmatprep.subr.mxu0 0.0
    %1537 = vmatpush1.msra.mxu0 0.0
    %1538 = vmatprep.subr.mxu0 0.0
    %1539 = vmatpush1.msra.mxu0 0.0
    %1540 = vmatprep.subr.mxu0 0.0
    %1541 = vmatpush1.msra.mxu0 0.0
    %1542 = vmatprep.subr.mxu0 0.0
    %1543 = vmatpush1.msra.mxu0 0.0
    %1544 = vmatprep.subr.mxu0 0.0
    %1545 = vmatpush1.msra.mxu0 0.0
    %1546 = vmatprep.subr.mxu0 0.0
    %1547 = vmatpush1.msra.mxu0 0.0
    %1548 = vmatprep.subr.mxu0 0.0
    %1549 = vmatpush1.msra.mxu0 0.0
    %1550 = vmatprep.subr.mxu0 0.0
    %1551 = vmatpush1.msra.mxu0 0.0
    %1552 = vmatprep.subr.mxu0 0.0
    %1553 = vmatpush1.msra.mxu0 0.0
    %1554 = vmatprep.subr.mxu0 0.0
    %1555 = vmatpush1.msra.mxu0 0.0
    %1556 = vmatprep.subr.mxu0 0.0
    %1557 = vmatpush1.msra.mxu0 0.0
    %1558 = vmatprep.subr.mxu0 0.0
    %1559 = vmatpush1.msra.mxu0 0.0
    %1560 = vmatprep.subr.mxu0 0.0
    %1561 = vmatpush1.msra.mxu0 0.0
    %1562 = vmatprep.subr.mxu0 0.0
    %1563 = vmatpush1.msra.mxu0 0.0
    %1564 = vmatprep.subr.mxu0 0.0
    %1565 = vmatpush1.msra.mxu0 0.0
    %1566 = vmatprep.subr.mxu0 0.0
    %1567 = vmatpush1.msra.mxu0 0.0
    %1568 = vmatprep.subr.mxu0 0.0
    %1569 = vmatpush1.msra.mxu0 0.0
    %1570 = vmatprep.subr.mxu0 0.0
    %1571 = vmatpush1.msra.mxu0 0.0
    %1572 = vmatprep.subr.mxu0 0.0
    %1573 = vmatpush1.msra.mxu0 0.0
    %1574 = vmatprep.subr.mxu0 0.0
    %1575 = vmatpush1.msra.mxu0 0.0
    %1576 = vmatprep.subr.mxu0 0.0
    %1577 = vmatpush1.msra.mxu0 0.0
    %1578 = vmatprep.subr.mxu0 0.0
    %1579 = vmatpush1.msra.mxu0 0.0
    %1580 = vmatprep.subr.mxu0 0.0
    %1581 = vmatpush1.msra.mxu0 0.0
    %1582 = vmatprep.subr.mxu0 0.0
    %1583 = vmatpush1.msra.mxu0 0.0
    %1584 = vmatprep.subr.mxu0 0.0
    %1585 = vmatpush1.msra.mxu0 0.0
    %1586 = vmatprep.subr.mxu0 0.0
    %1587 = vmatpush1.msra.mxu0 0.0
    %1588 = vmatprep.subr.mxu0 0.0
    %1589 = vmatpush1.msra.mxu0 0.0
    %1590 = vmatprep.mubr.f32.mxu0 0.0
    %1591 = vmatmul.mubr.f32.gmra.mrb[0].mxu0 %v1524
    %v1592 = vpop.f32.mrb[0].mxu0
    %v1593 = vadd.f32 %v1518, %v1592
    %v1594 = vpop.f32.mrb[0].mxu0
    %1595 = vdwg.mxu0
    %vm1596 = vcmask 9216
    %1597 = vst.msk [vmem:[#allocation7] sm:$0x3] %vm1596, %v1593
    // Predicated region
    $region58: #{audionet_forward.1} parent=1 // pred_check
      _
    $region59: #{audionet_forward.1} parent=1 // pred_check_branch
      %1599 = sbr.rel (0) target = $region61
    $region60: #{audionet_forward.1} parent=1 // pred_region
      %s1601 = ssub.s32 32, 32
      %1602 = vsyncadd [#allocation4], %s1601
      %s1604 = sshll.u32 [#allocation7], 4
      %s1605 = int_to_ptr.vmem [resolvable:$true] %s1604
      %1607 = dma.vmem_to_hbm [thread:$0]  %s1605, 32, %s12, [#allocation4]
    $region61: #{audionet_forward.1} parent=1 // pred_fallthru
      _
    // Predicated region
    $region62: #{audionet_forward.1} parent=1 // pred_check
      _
    $region63: #{audionet_forward.1} parent=1 // pred_check_branch
      %1609 = sbr.rel (0) target = $region65
    $region64: #{audionet_forward.1} parent=1 // pred_region
      %1610 = dma.done [#allocation4], 32
    $region65: #{audionet_forward.1} parent=1 // pred_fallthru
      _
    %1611 = vsyncpa [#allocation3], 1
    %1612 = vsyncpa [#allocation6], 1
    %1613 = vsyncpa [#allocation4], 1

</llo_original>
